<compile_context>
chip_gen: v6e
topology: v6e:2x2x1
jax: 0.10.0
libtpu: 0.0.40
codegen_flags: <defaults>
</compile_context>

<pallas_src>
import functools

import jax
import jax.numpy as jnp
from jax.experimental import pallas as pl
from jax.experimental.pallas import tpu as pltpu


# ----------------------------- fused kernel -------------------------------- #

def _make_fused_kernel(h, w, cin, cmid_p, cout_p, stride, th, wo, add_residual):
    """Builds the fused expand->depthwise->project kernel (constants closed over)."""
    n_in = stride * (th - 1) + 3          # haloed input rows needed per output tile

    def kernel(x_ref, w1_ref, b1_ref, wdw_ref, bdw_ref, w2_ref, b2_ref, *rest):
        if add_residual:
            e_ref, o_ref = rest
        else:
            (o_ref,) = rest

        r = pl.program_id(1)
        o0 = pl.multiple_of(r * th, th)            # first output row of this tile
        in_start = stride * o0 - 1                 # first (haloed) input row

        # ---- stage 1: 1x1 expand conv (+ folded bn1) + ReLU6 over haloed rows --
        rows = []
        for j in range(n_in):
            g = in_start + j
            gc = jnp.minimum(jnp.maximum(g, 0), h - 1)
            rows.append(x_ref[pl.ds(gc, 1), :, :])             # (1, w, cin)
        x_win = jnp.concatenate(rows, axis=0)                  # (n_in, w, cin)
        hid = jnp.dot(x_win.reshape(n_in * w, cin), w1_ref[...],
                      preferred_element_type=jnp.float32)      # (n_in*w, cmid_p)
        hid = jnp.clip(hid + b1_ref[...], 0.0, 6.0)
        hid = hid.reshape(n_in, w, cmid_p)

        # zero rows that fall outside the image (depthwise zero padding, rows)
        gidx = in_start + jax.lax.broadcasted_iota(jnp.int32, (n_in, 1, 1), 0)
        hid = jnp.where((gidx >= 0) & (gidx < h), hid, 0.0)

        # zero-pad the two column borders (depthwise zero padding, cols)
        zcol = jnp.zeros((n_in, 1, cmid_p), jnp.float32)
        hid = jnp.concatenate([zcol, hid, zcol], axis=1)       # (n_in, w+2, cmid_p)

        # ---- stage 2: 3x3 depthwise conv (+ folded dw_bn) + ReLU6 --------------
        wdw = wdw_ref[...]                                     # (9, cmid_p)
        bdw = bdw_ref[...].reshape(1, 1, cmid_p)
        acc = jnp.zeros((th, w, cmid_p), jnp.float32)          # stride-1 columns
        for kh in range(3):
            if stride == 1:
                rows_kh = hid[kh:kh + th]                      # (th, w+2, cmid_p)
            else:
                rows_kh = jnp.concatenate(
                    [hid[kh + stride * t][None] for t in range(th)], axis=0)
            for kw in range(3):
                k = kh * 3 + kw
                tap = wdw[k:k + 1, :][None]                    # (1, 1, cmid_p)
                acc = acc + rows_kh[:, kw:kw + w, :] * tap
        if stride == 1:
            dw = acc                                           # wo == w
        else:
            need = stride * wo
            if need > w:
                acc = jnp.concatenate(
                    [acc, jnp.zeros((th, need - w, cmid_p), jnp.float32)], axis=1)
            dw = acc[:, :need, :].reshape(th, wo, stride, cmid_p)[:, :, 0, :]
        dw = jnp.clip(dw + bdw, 0.0, 6.0)                      # (th, wo, cmid_p)

        # ---- stage 3: 1x1 project conv (+ folded bn2) + residual ---------------
        y = jnp.dot(dw.reshape(th * wo, cmid_p), w2_ref[...],
                    preferred_element_type=jnp.float32)        # (th*wo, cout_p)
        y = y + b2_ref[...]
        if add_residual:
            res = x_ref[pl.ds(o0, th), :, :]                   # (th, w, cin); w == wo
            y = y + jnp.dot(res.reshape(th * wo, cin), e_ref[...],
                            preferred_element_type=jnp.float32)
        o_ref[...] = y.reshape(th, wo, cout_p).astype(o_ref.dtype)

    return kernel


# ----------------------------- wrapper -------------------------------------- #

def _fold_bn(gamma, beta, mean, var, eps=1e-5):
    scale = gamma / jnp.sqrt(var + eps)
    return scale, beta - mean * scale


def _round_up(x, m):
    return (x + m - 1) // m * m


@functools.partial(jax.jit, static_argnames=("stride", "row_tile"))
def conv2_unit_forward(x_nchw, params, stride=1, row_tile=8):
    """Forward pass of ConV2Unit.  x_nchw: (N, Cin, H, W) f32 -> (N, Cout, Ho, Wo)."""
    n, cin, h, w = x_nchw.shape
    cmid = params["w1"].shape[1]
    cout = params["w2"].shape[1]
    f32 = jnp.float32

    cmid_p = _round_up(cmid, 128)                 # lane-dense channel dims
    cout_p = _round_up(cout, 128)
    ho = (h - 1) // stride + 1
    wo = (w - 1) // stride + 1
    th = max(1, min(row_tile, ho))                # output rows per grid step
    add_residual = (stride == 1)

    x = jnp.transpose(x_nchw, (0, 2, 3, 1)).astype(f32)        # NCHW -> NHWC

    s1, b1 = _fold_bn(*params["bn1"])
    sdw, bdw = _fold_bn(*params["dw_bn"])
    s2, b2 = _fold_bn(*params["bn2"])

    # BN scale folded into weights; everything zero-padded to lane-dense widths.
    w1p = jnp.zeros((cin, cmid_p), f32).at[:, :cmid].set(params["w1"] * s1[None, :])
    b1p = jnp.zeros((1, cmid_p), f32).at[:, :cmid].set(b1[None, :])
    wdwp = jnp.zeros((9, cmid_p), f32).at[:, :cmid].set(params["w_dw"] * sdw[None, :])
    bdwp = jnp.zeros((1, cmid_p), f32).at[:, :cmid].set(bdw[None, :])
    w2p = jnp.zeros((cmid_p, cout_p), f32).at[:cmid, :cout].set(params["w2"] * s2[None, :])
    b2p = jnp.zeros((1, cout_p), f32).at[:, :cout].set(b2[None, :])

    kernel = _make_fused_kernel(h, w, cin, cmid_p, cout_p, stride, th, wo,
                                add_residual)

    in_specs = [
        pl.BlockSpec((None, h, w, cin), lambda b, r: (b, 0, 0, 0)),   # whole image/batch
        pl.BlockSpec((cin, cmid_p), lambda b, r: (0, 0)),
        pl.BlockSpec((1, cmid_p), lambda b, r: (0, 0)),
        pl.BlockSpec((9, cmid_p), lambda b, r: (0, 0)),
        pl.BlockSpec((1, cmid_p), lambda b, r: (0, 0)),
        pl.BlockSpec((cmid_p, cout_p), lambda b, r: (0, 0)),
        pl.BlockSpec((1, cout_p), lambda b, r: (0, 0)),
    ]
    args = [x, w1p, b1p, wdwp, bdwp, w2p, b2p]
    if add_residual:
        # IdentityPadding residual as an embedding matmul: (cin -> cout_p)
        e = jnp.eye(cin, cout_p, dtype=f32)
        in_specs.append(pl.BlockSpec((cin, cout_p), lambda b, r: (0, 0)))
        args.append(e)

    out = pl.pallas_call(
        kernel,
        out_shape=jax.ShapeDtypeStruct((n, ho, wo, cout_p), f32),
        grid=(n, pl.cdiv(ho, th)),
        in_specs=in_specs,
        out_specs=pl.BlockSpec((None, th, wo, cout_p), lambda b, r: (b, r, 0, 0)),
        compiler_params=pltpu.CompilerParams(
            dimension_semantics=("parallel", "parallel")),
    )(*args)

    out = out[..., :cout]                          # drop lane padding (tiny slice)
    return jnp.transpose(out, (0, 3, 1, 2))        # NHWC -> NCHW


# ----------------------------- reference (pure JAX) ------------------------- #

def _reference(x_nchw, params, stride=1, eps=1e-5):
    x = x_nchw.astype(jnp.float32)
    n, cin, h, w = x.shape

    def bn(y, p):
        g, b, m, v = p
        return (y - m[None, :, None, None]) / jnp.sqrt(v[None, :, None, None] + eps) \
            * g[None, :, None, None] + b[None, :, None, None]

    hid = jnp.einsum("nchw,cm->nmhw", x, params["w1"])
    hid = jnp.clip(bn(hid, params["bn1"]), 0.0, 6.0)

    hp = jnp.pad(hid, ((0, 0), (0, 0), (1, 1), (1, 1)))
    ho = (h - 1) // stride + 1
    wo = (w - 1) // stride + 1
    cmid = hid.shape[1]
    acc = jnp.zeros((n, cmid, ho, wo), jnp.float32)
    for kh in range(3):
        for kw in range(3):
            patch = hp[:, :, kh:kh + stride * (ho - 1) + 1:stride,
                          kw:kw + stride * (wo - 1) + 1:stride]
            acc = acc + patch * params["w_dw"][kh * 3 + kw][None, :, None, None]
    dw = jnp.clip(bn(acc, params["dw_bn"]), 0.0, 6.0)

    out = jnp.einsum("nmhw,mo->nohw", dw, params["w2"])
    out = bn(out, params["bn2"])
    if stride == 1:
        cout = out.shape[1]
        c = min(cin, cout)
        res = jnp.zeros_like(out).at[:, :c].set(x[:, :c])
        out = out + res
    return out


# ----------------------------- demo ----------------------------------------- #

def _bn_params(key, c):
    k1, k2, k3, k4 = jax.random.split(key, 4)
    gamma = jax.random.uniform(k1, (c,), jnp.float32, 0.5, 1.5)
    beta = jax.random.normal(k2, (c,), jnp.float32) * 0.1
    mean = jax.random.normal(k3, (c,), jnp.float32) * 0.1
    var = jax.random.uniform(k4, (c,), jnp.float32, 0.5, 1.5)
    return (gamma, beta, mean, var)


if __name__ == "__main__":
    key = jax.random.PRNGKey(0)
    k = jax.random.split(key, 8)

    # small shapes consistent with the module
    N, Cin, H, W = 2, 4, 16, 16
    Cout, t, stride = 8, 6, 1
    Cmid = Cin * t

    params = {
        # conv1 weight: torch (Cmid, Cin, 1, 1) -> stored as (Cin, Cmid)
        "w1": jax.random.normal(k[0], (Cin, Cmid), jnp.float32) * 0.1,
        # dw_conv weight: torch (Cmid, 1, 3, 3) -> stored as (9, Cmid), tap = kh*3+kw
        "w_dw": jax.random.normal(k[1], (9, Cmid), jnp.float32) * 0.1,
        # conv2 weight: torch (Cout, Cmid, 1, 1) -> stored as (Cmid, Cout)
        "w2": jax.random.normal(k[2], (Cmid, Cout), jnp.float32) * 0.1,
        "bn1": _bn_params(k[3], Cmid),
        "dw_bn": _bn_params(k[4], Cmid),
        "bn2": _bn_params(k[5], Cout),
    }

    x = jax.random.normal(k[6], (N, Cin, H, W), jnp.float32)

    out = conv2_unit_forward(x, params, stride=stride)
    jax.block_until_ready(out)

    ref = _reference(x, params, stride=stride)
    assert out.shape == (N, Cout, H, W), out.shape
    assert jnp.all(jnp.isfinite(out))
    assert jnp.allclose(out, ref, atol=2e-2, rtol=2e-2), \
        float(jnp.max(jnp.abs(out - ref)))
    print("KERNEL_OK")
</pallas_src>

<mosaic_0001>
module attributes {stable_mosaic.version = 11 : i64} {
  func.func @kernel(%arg0: i32, %arg1: i32, %arg2: memref<1x16x16x4xf32, #tpu.memory_space<vmem>>, %arg3: memref<4x128xf32, #tpu.memory_space<vmem>>, %arg4: memref<1x128xf32, #tpu.memory_space<vmem>>, %arg5: memref<9x128xf32, #tpu.memory_space<vmem>>, %arg6: memref<1x128xf32, #tpu.memory_space<vmem>>, %arg7: memref<128x128xf32, #tpu.memory_space<vmem>>, %arg8: memref<1x128xf32, #tpu.memory_space<vmem>>, %arg9: memref<4x128xf32, #tpu.memory_space<vmem>>, %arg10: memref<1x8x16x128xf32, #tpu.memory_space<vmem>>) attributes {dimension_semantics = [#tpu.dimension_semantics<parallel>, #tpu.dimension_semantics<parallel>], iteration_bounds = array<i64: 2, 2>, scalar_prefetch = 0 : i64, scratch_operands = 0 : i64, tpu.core_type = #tpu.core_type<tc>, window_params = [{transform_indices = @transform_0, window_bounds = array<i64: 1, 16, 16, 4>}, {pipeline_mode = #tpu.pipeline_mode<synchronous>, transform_indices = @transform_1, window_bounds = array<i64: 4, 128>}, {pipeline_mode = #tpu.pipeline_mode<synchronous>, transform_indices = @transform_2, window_bounds = array<i64: 1, 128>}, {pipeline_mode = #tpu.pipeline_mode<synchronous>, transform_indices = @transform_3, window_bounds = array<i64: 9, 128>}, {pipeline_mode = #tpu.pipeline_mode<synchronous>, transform_indices = @transform_4, window_bounds = array<i64: 1, 128>}, {pipeline_mode = #tpu.pipeline_mode<synchronous>, transform_indices = @transform_5, window_bounds = array<i64: 128, 128>}, {pipeline_mode = #tpu.pipeline_mode<synchronous>, transform_indices = @transform_6, window_bounds = array<i64: 1, 128>}, {pipeline_mode = #tpu.pipeline_mode<synchronous>, transform_indices = @transform_7, window_bounds = array<i64: 4, 128>}, {transform_indices = @transform_8, window_bounds = array<i64: 1, 8, 16, 128>}]} {
    %c8_i32 = arith.constant 8 : i32
    %0 = arith.muli %arg1, %c8_i32 : i32
    %1 = tpu.assume_multiple %0, 8 : i32
    %c1_i32 = arith.constant 1 : i32
    %2 = arith.muli %c1_i32, %1 : i32
    %c1_i32_0 = arith.constant 1 : i32
    %3 = arith.subi %2, %c1_i32_0 : i32
    %c0_i32 = arith.constant 0 : i32
    %4 = arith.addi %3, %c0_i32 : i32
    %c0_i32_1 = arith.constant 0 : i32
    %5 = arith.maxsi %4, %c0_i32_1 : i32
    %c15_i32 = arith.constant 15 : i32
    %6 = arith.minsi %5, %c15_i32 : i32
    %c0 = arith.constant 0 : index
    %7 = arith.index_cast %6 : i32 to index
    %c0_2 = arith.constant 0 : index
    %c0_3 = arith.constant 0 : index
    %8 = vector.load %arg2[%c0, %7, %c0_2, %c0_3] : memref<1x16x16x4xf32, #tpu.memory_space<vmem>>, vector<1x1x16x4xf32>
    %9 = vector.shape_cast %8 : vector<1x1x16x4xf32> to vector<1x16x4xf32>
    %c1_i32_4 = arith.constant 1 : i32
    %10 = arith.addi %3, %c1_i32_4 : i32
    %c0_i32_5 = arith.constant 0 : i32
    %11 = arith.maxsi %10, %c0_i32_5 : i32
    %c15_i32_6 = arith.constant 15 : i32
    %12 = arith.minsi %11, %c15_i32_6 : i32
    %c0_7 = arith.constant 0 : index
    %13 = arith.index_cast %12 : i32 to index
    %c0_8 = arith.constant 0 : index
    %c0_9 = arith.constant 0 : index
    %14 = vector.load %arg2[%c0_7, %13, %c0_8, %c0_9] : memref<1x16x16x4xf32, #tpu.memory_space<vmem>>, vector<1x1x16x4xf32>
    %15 = vector.shape_cast %14 : vector<1x1x16x4xf32> to vector<1x16x4xf32>
    %c2_i32 = arith.constant 2 : i32
    %16 = arith.addi %3, %c2_i32 : i32
    %c0_i32_10 = arith.constant 0 : i32
    %17 = arith.maxsi %16, %c0_i32_10 : i32
    %c15_i32_11 = arith.constant 15 : i32
    %18 = arith.minsi %17, %c15_i32_11 : i32
    %c0_12 = arith.constant 0 : index
    %19 = arith.index_cast %18 : i32 to index
    %c0_13 = arith.constant 0 : index
    %c0_14 = arith.constant 0 : index
    %20 = vector.load %arg2[%c0_12, %19, %c0_13, %c0_14] : memref<1x16x16x4xf32, #tpu.memory_space<vmem>>, vector<1x1x16x4xf32>
    %21 = vector.shape_cast %20 : vector<1x1x16x4xf32> to vector<1x16x4xf32>
    %c3_i32 = arith.constant 3 : i32
    %22 = arith.addi %3, %c3_i32 : i32
    %c0_i32_15 = arith.constant 0 : i32
    %23 = arith.maxsi %22, %c0_i32_15 : i32
    %c15_i32_16 = arith.constant 15 : i32
    %24 = arith.minsi %23, %c15_i32_16 : i32
    %c0_17 = arith.constant 0 : index
    %25 = arith.index_cast %24 : i32 to index
    %c0_18 = arith.constant 0 : index
    %c0_19 = arith.constant 0 : index
    %26 = vector.load %arg2[%c0_17, %25, %c0_18, %c0_19] : memref<1x16x16x4xf32, #tpu.memory_space<vmem>>, vector<1x1x16x4xf32>
    %27 = vector.shape_cast %26 : vector<1x1x16x4xf32> to vector<1x16x4xf32>
    %c4_i32 = arith.constant 4 : i32
    %28 = arith.addi %3, %c4_i32 : i32
    %c0_i32_20 = arith.constant 0 : i32
    %29 = arith.maxsi %28, %c0_i32_20 : i32
    %c15_i32_21 = arith.constant 15 : i32
    %30 = arith.minsi %29, %c15_i32_21 : i32
    %c0_22 = arith.constant 0 : index
    %31 = arith.index_cast %30 : i32 to index
    %c0_23 = arith.constant 0 : index
    %c0_24 = arith.constant 0 : index
    %32 = vector.load %arg2[%c0_22, %31, %c0_23, %c0_24] : memref<1x16x16x4xf32, #tpu.memory_space<vmem>>, vector<1x1x16x4xf32>
    %33 = vector.shape_cast %32 : vector<1x1x16x4xf32> to vector<1x16x4xf32>
    %c5_i32 = arith.constant 5 : i32
    %34 = arith.addi %3, %c5_i32 : i32
    %c0_i32_25 = arith.constant 0 : i32
    %35 = arith.maxsi %34, %c0_i32_25 : i32
    %c15_i32_26 = arith.constant 15 : i32
    %36 = arith.minsi %35, %c15_i32_26 : i32
    %c0_27 = arith.constant 0 : index
    %37 = arith.index_cast %36 : i32 to index
    %c0_28 = arith.constant 0 : index
    %c0_29 = arith.constant 0 : index
    %38 = vector.load %arg2[%c0_27, %37, %c0_28, %c0_29] : memref<1x16x16x4xf32, #tpu.memory_space<vmem>>, vector<1x1x16x4xf32>
    %39 = vector.shape_cast %38 : vector<1x1x16x4xf32> to vector<1x16x4xf32>
    %c6_i32 = arith.constant 6 : i32
    %40 = arith.addi %3, %c6_i32 : i32
    %c0_i32_30 = arith.constant 0 : i32
    %41 = arith.maxsi %40, %c0_i32_30 : i32
    %c15_i32_31 = arith.constant 15 : i32
    %42 = arith.minsi %41, %c15_i32_31 : i32
    %c0_32 = arith.constant 0 : index
    %43 = arith.index_cast %42 : i32 to index
    %c0_33 = arith.constant 0 : index
    %c0_34 = arith.constant 0 : index
    %44 = vector.load %arg2[%c0_32, %43, %c0_33, %c0_34] : memref<1x16x16x4xf32, #tpu.memory_space<vmem>>, vector<1x1x16x4xf32>
    %45 = vector.shape_cast %44 : vector<1x1x16x4xf32> to vector<1x16x4xf32>
    %c7_i32 = arith.constant 7 : i32
    %46 = arith.addi %3, %c7_i32 : i32
    %c0_i32_35 = arith.constant 0 : i32
    %47 = arith.maxsi %46, %c0_i32_35 : i32
    %c15_i32_36 = arith.constant 15 : i32
    %48 = arith.minsi %47, %c15_i32_36 : i32
    %c0_37 = arith.constant 0 : index
    %49 = arith.index_cast %48 : i32 to index
    %c0_38 = arith.constant 0 : index
    %c0_39 = arith.constant 0 : index
    %50 = vector.load %arg2[%c0_37, %49, %c0_38, %c0_39] : memref<1x16x16x4xf32, #tpu.memory_space<vmem>>, vector<1x1x16x4xf32>
    %51 = vector.shape_cast %50 : vector<1x1x16x4xf32> to vector<1x16x4xf32>
    %c8_i32_40 = arith.constant 8 : i32
    %52 = arith.addi %3, %c8_i32_40 : i32
    %c0_i32_41 = arith.constant 0 : i32
    %53 = arith.maxsi %52, %c0_i32_41 : i32
    %c15_i32_42 = arith.constant 15 : i32
    %54 = arith.minsi %53, %c15_i32_42 : i32
    %c0_43 = arith.constant 0 : index
    %55 = arith.index_cast %54 : i32 to index
    %c0_44 = arith.constant 0 : index
    %c0_45 = arith.constant 0 : index
    %56 = vector.load %arg2[%c0_43, %55, %c0_44, %c0_45] : memref<1x16x16x4xf32, #tpu.memory_space<vmem>>, vector<1x1x16x4xf32>
    %57 = vector.shape_cast %56 : vector<1x1x16x4xf32> to vector<1x16x4xf32>
    %c9_i32 = arith.constant 9 : i32
    %58 = arith.addi %3, %c9_i32 : i32
    %c0_i32_46 = arith.constant 0 : i32
    %59 = arith.maxsi %58, %c0_i32_46 : i32
    %c15_i32_47 = arith.constant 15 : i32
    %60 = arith.minsi %59, %c15_i32_47 : i32
    %c0_48 = arith.constant 0 : index
    %61 = arith.index_cast %60 : i32 to index
    %c0_49 = arith.constant 0 : index
    %c0_50 = arith.constant 0 : index
    %62 = vector.load %arg2[%c0_48, %61, %c0_49, %c0_50] : memref<1x16x16x4xf32, #tpu.memory_space<vmem>>, vector<1x1x16x4xf32>
    %63 = vector.shape_cast %62 : vector<1x1x16x4xf32> to vector<1x16x4xf32>
    %64 = tpu.concatenate %9, %15, %21, %27, %33, %39, %45, %51, %57, %63 in 0 : vector<1x16x4xf32>, vector<1x16x4xf32>, vector<1x16x4xf32>, vector<1x16x4xf32>, vector<1x16x4xf32>, vector<1x16x4xf32>, vector<1x16x4xf32>, vector<1x16x4xf32>, vector<1x16x4xf32>, vector<1x16x4xf32> -> vector<10x16x4xf32>
    %65 = vector.shape_cast %64 : vector<10x16x4xf32> to vector<160x4xf32>
    %c0_51 = arith.constant 0 : index
    %c0_52 = arith.constant 0 : index
    %66 = vector.load %arg3[%c0_51, %c0_52] : memref<4x128xf32, #tpu.memory_space<vmem>>, vector<4x128xf32>
    %cst = arith.constant dense<0.000000e+00> : vector<160x128xf32>
    %67 = tpu.matmul %65, %66, %cst {dimension_numbers = #tpu.dot_dimension_numbers<[1], [0], [0], [1], [0, 0, 1, 1], [], []>} : vector<160x4xf32>, vector<4x128xf32>, vector<160x128xf32> -> vector<160x128xf32>
    %c0_53 = arith.constant 0 : index
    %c0_54 = arith.constant 0 : index
    %68 = vector.load %arg4[%c0_53, %c0_54] : memref<1x128xf32, #tpu.memory_space<vmem>>, vector<1x128xf32>
    %69 = vector.broadcast %68 : vector<1x128xf32> to vector<160x128xf32>
    %70 = arith.addf %67, %69 : vector<160x128xf32>
    %cst_55 = arith.constant 0.000000e+00 : f32
    %cst_56 = arith.constant 6.000000e+00 : f32
    %71 = vector.broadcast %cst_55 : f32 to vector<160x128xf32>
    %72 = arith.maximumf %71, %70 : vector<160x128xf32>
    %73 = vector.broadcast %cst_56 : f32 to vector<160x128xf32>
    %74 = arith.minimumf %73, %72 : vector<160x128xf32>
    %75 = vector.shape_cast %74 : vector<160x128xf32> to vector<10x16x128xf32>
    %76 = tpu.iota {dimensions = array<i32: 0>} : vector<10x1x1xi32>
    %77 = vector.broadcast %3 : i32 to vector<10x1x1xi32>
    %78 = arith.addi %77, %76 : vector<10x1x1xi32>
    %c0_i32_57 = arith.constant 0 : i32
    %79 = vector.broadcast %c0_i32_57 : i32 to vector<10x1x1xi32>
    %80 = arith.cmpi sge, %78, %79 : vector<10x1x1xi32>
    %c16_i32 = arith.constant 16 : i32
    %81 = vector.broadcast %c16_i32 : i32 to vector<10x1x1xi32>
    %82 = arith.cmpi slt, %78, %81 : vector<10x1x1xi32>
    %83 = arith.andi %80, %82 : vector<10x1x1xi1>
    %cst_58 = arith.constant 0.000000e+00 : f32
    %84 = vector.shape_cast %83 : vector<10x1x1xi1> to vector<10x1x1xi1>
    %85 = vector.broadcast %84 : vector<10x1x1xi1> to vector<10x16x128xi1>
    %86 = vector.broadcast %cst_58 : f32 to vector<10x16x128xf32>
    %87 = arith.select %85, %75, %86 : vector<10x16x128xi1>, vector<10x16x128xf32>
    %cst_59 = arith.constant 0.000000e+00 : f32
    %88 = vector.broadcast %cst_59 : f32 to vector<10x1x128xf32>
    %89 = tpu.concatenate %88, %87, %88 in 1 : vector<10x1x128xf32>, vector<10x16x128xf32>, vector<10x1x128xf32> -> vector<10x18x128xf32>
    %c0_60 = arith.constant 0 : index
    %c0_61 = arith.constant 0 : index
    %90 = vector.load %arg5[%c0_60, %c0_61] : memref<9x128xf32, #tpu.memory_space<vmem>>, vector<9x128xf32>
    %c0_62 = arith.constant 0 : index
    %c0_63 = arith.constant 0 : index
    %91 = vector.load %arg6[%c0_62, %c0_63] : memref<1x128xf32, #tpu.memory_space<vmem>>, vector<1x128xf32>
    %92 = vector.shape_cast %91 : vector<1x128xf32> to vector<1x1x128xf32>
    %cst_64 = arith.constant 0.000000e+00 : f32
    %93 = vector.broadcast %cst_64 : f32 to vector<8x16x128xf32>
    %94 = vector.extract_strided_slice %89 {offsets = [0, 0, 0], sizes = [8, 18, 128], strides = [1, 1, 1]} : vector<10x18x128xf32> to vector<8x18x128xf32>
    %95 = vector.extract_strided_slice %90 {offsets = [0, 0], sizes = [1, 128], strides = [1, 1]} : vector<9x128xf32> to vector<1x128xf32>
    %96 = vector.shape_cast %95 : vector<1x128xf32> to vector<1x1x128xf32>
    %97 = vector.extract_strided_slice %94 {offsets = [0, 0, 0], sizes = [8, 16, 128], strides = [1, 1, 1]} : vector<8x18x128xf32> to vector<8x16x128xf32>
    %98 = vector.broadcast %96 : vector<1x1x128xf32> to vector<8x16x128xf32>
    %99 = arith.mulf %97, %98 : vector<8x16x128xf32>
    %100 = arith.addf %93, %99 : vector<8x16x128xf32>
    %101 = vector.extract_strided_slice %90 {offsets = [1, 0], sizes = [1, 128], strides = [1, 1]} : vector<9x128xf32> to vector<1x128xf32>
    %102 = vector.shape_cast %101 : vector<1x128xf32> to vector<1x1x128xf32>
    %103 = vector.extract_strided_slice %94 {offsets = [0, 1, 0], sizes = [8, 16, 128], strides = [1, 1, 1]} : vector<8x18x128xf32> to vector<8x16x128xf32>
    %104 = vector.broadcast %102 : vector<1x1x128xf32> to vector<8x16x128xf32>
    %105 = arith.mulf %103, %104 : vector<8x16x128xf32>
    %106 = arith.addf %100, %105 : vector<8x16x128xf32>
    %107 = vector.extract_strided_slice %90 {offsets = [2, 0], sizes = [1, 128], strides = [1, 1]} : vector<9x128xf32> to vector<1x128xf32>
    %108 = vector.shape_cast %107 : vector<1x128xf32> to vector<1x1x128xf32>
    %109 = vector.extract_strided_slice %94 {offsets = [0, 2, 0], sizes = [8, 16, 128], strides = [1, 1, 1]} : vector<8x18x128xf32> to vector<8x16x128xf32>
    %110 = vector.broadcast %108 : vector<1x1x128xf32> to vector<8x16x128xf32>
    %111 = arith.mulf %109, %110 : vector<8x16x128xf32>
    %112 = arith.addf %106, %111 : vector<8x16x128xf32>
    %113 = vector.extract_strided_slice %89 {offsets = [1, 0, 0], sizes = [8, 18, 128], strides = [1, 1, 1]} : vector<10x18x128xf32> to vector<8x18x128xf32>
    %114 = vector.extract_strided_slice %90 {offsets = [3, 0], sizes = [1, 128], strides = [1, 1]} : vector<9x128xf32> to vector<1x128xf32>
    %115 = vector.shape_cast %114 : vector<1x128xf32> to vector<1x1x128xf32>
    %116 = vector.extract_strided_slice %113 {offsets = [0, 0, 0], sizes = [8, 16, 128], strides = [1, 1, 1]} : vector<8x18x128xf32> to vector<8x16x128xf32>
    %117 = vector.broadcast %115 : vector<1x1x128xf32> to vector<8x16x128xf32>
    %118 = arith.mulf %116, %117 : vector<8x16x128xf32>
    %119 = arith.addf %112, %118 : vector<8x16x128xf32>
    %120 = vector.extract_strided_slice %90 {offsets = [4, 0], sizes = [1, 128], strides = [1, 1]} : vector<9x128xf32> to vector<1x128xf32>
    %121 = vector.shape_cast %120 : vector<1x128xf32> to vector<1x1x128xf32>
    %122 = vector.extract_strided_slice %113 {offsets = [0, 1, 0], sizes = [8, 16, 128], strides = [1, 1, 1]} : vector<8x18x128xf32> to vector<8x16x128xf32>
    %123 = vector.broadcast %121 : vector<1x1x128xf32> to vector<8x16x128xf32>
    %124 = arith.mulf %122, %123 : vector<8x16x128xf32>
    %125 = arith.addf %119, %124 : vector<8x16x128xf32>
    %126 = vector.extract_strided_slice %90 {offsets = [5, 0], sizes = [1, 128], strides = [1, 1]} : vector<9x128xf32> to vector<1x128xf32>
    %127 = vector.shape_cast %126 : vector<1x128xf32> to vector<1x1x128xf32>
    %128 = vector.extract_strided_slice %113 {offsets = [0, 2, 0], sizes = [8, 16, 128], strides = [1, 1, 1]} : vector<8x18x128xf32> to vector<8x16x128xf32>
    %129 = vector.broadcast %127 : vector<1x1x128xf32> to vector<8x16x128xf32>
    %130 = arith.mulf %128, %129 : vector<8x16x128xf32>
    %131 = arith.addf %125, %130 : vector<8x16x128xf32>
    %132 = vector.extract_strided_slice %89 {offsets = [2, 0, 0], sizes = [8, 18, 128], strides = [1, 1, 1]} : vector<10x18x128xf32> to vector<8x18x128xf32>
    %133 = vector.extract_strided_slice %90 {offsets = [6, 0], sizes = [1, 128], strides = [1, 1]} : vector<9x128xf32> to vector<1x128xf32>
    %134 = vector.shape_cast %133 : vector<1x128xf32> to vector<1x1x128xf32>
    %135 = vector.extract_strided_slice %132 {offsets = [0, 0, 0], sizes = [8, 16, 128], strides = [1, 1, 1]} : vector<8x18x128xf32> to vector<8x16x128xf32>
    %136 = vector.broadcast %134 : vector<1x1x128xf32> to vector<8x16x128xf32>
    %137 = arith.mulf %135, %136 : vector<8x16x128xf32>
    %138 = arith.addf %131, %137 : vector<8x16x128xf32>
    %139 = vector.extract_strided_slice %90 {offsets = [7, 0], sizes = [1, 128], strides = [1, 1]} : vector<9x128xf32> to vector<1x128xf32>
    %140 = vector.shape_cast %139 : vector<1x128xf32> to vector<1x1x128xf32>
    %141 = vector.extract_strided_slice %132 {offsets = [0, 1, 0], sizes = [8, 16, 128], strides = [1, 1, 1]} : vector<8x18x128xf32> to vector<8x16x128xf32>
    %142 = vector.broadcast %140 : vector<1x1x128xf32> to vector<8x16x128xf32>
    %143 = arith.mulf %141, %142 : vector<8x16x128xf32>
    %144 = arith.addf %138, %143 : vector<8x16x128xf32>
    %145 = vector.extract_strided_slice %90 {offsets = [8, 0], sizes = [1, 128], strides = [1, 1]} : vector<9x128xf32> to vector<1x128xf32>
    %146 = vector.shape_cast %145 : vector<1x128xf32> to vector<1x1x128xf32>
    %147 = vector.extract_strided_slice %132 {offsets = [0, 2, 0], sizes = [8, 16, 128], strides = [1, 1, 1]} : vector<8x18x128xf32> to vector<8x16x128xf32>
    %148 = vector.broadcast %146 : vector<1x1x128xf32> to vector<8x16x128xf32>
    %149 = arith.mulf %147, %148 : vector<8x16x128xf32>
    %150 = arith.addf %144, %149 : vector<8x16x128xf32>
    %151 = vector.broadcast %92 : vector<1x1x128xf32> to vector<8x16x128xf32>
    %152 = arith.addf %150, %151 : vector<8x16x128xf32>
    %cst_65 = arith.constant 0.000000e+00 : f32
    %cst_66 = arith.constant 6.000000e+00 : f32
    %153 = vector.broadcast %cst_65 : f32 to vector<8x16x128xf32>
    %154 = arith.maximumf %153, %152 : vector<8x16x128xf32>
    %155 = vector.broadcast %cst_66 : f32 to vector<8x16x128xf32>
    %156 = arith.minimumf %155, %154 : vector<8x16x128xf32>
    %157 = vector.shape_cast %156 : vector<8x16x128xf32> to vector<128x128xf32>
    %c0_67 = arith.constant 0 : index
    %c0_68 = arith.constant 0 : index
    %158 = vector.load %arg7[%c0_67, %c0_68] : memref<128x128xf32, #tpu.memory_space<vmem>>, vector<128x128xf32>
    %cst_69 = arith.constant dense<0.000000e+00> : vector<128x128xf32>
    %159 = tpu.matmul %157, %158, %cst_69 {dimension_numbers = #tpu.dot_dimension_numbers<[1], [0], [0], [1], [0, 0, 1, 1], [], []>} : vector<128x128xf32>, vector<128x128xf32>, vector<128x128xf32> -> vector<128x128xf32>
    %c0_70 = arith.constant 0 : index
    %c0_71 = arith.constant 0 : index
    %160 = vector.load %arg8[%c0_70, %c0_71] : memref<1x128xf32, #tpu.memory_space<vmem>>, vector<1x128xf32>
    %161 = vector.broadcast %160 : vector<1x128xf32> to vector<128x128xf32>
    %162 = arith.addf %159, %161 : vector<128x128xf32>
    %c0_72 = arith.constant 0 : index
    %163 = arith.index_cast %1 : i32 to index
    %c0_73 = arith.constant 0 : index
    %c0_74 = arith.constant 0 : index
    %164 = vector.load %arg2[%c0_72, %163, %c0_73, %c0_74] : memref<1x16x16x4xf32, #tpu.memory_space<vmem>>, vector<1x8x16x4xf32>
    %165 = vector.shape_cast %164 : vector<1x8x16x4xf32> to vector<8x16x4xf32>
    %166 = vector.shape_cast %165 : vector<8x16x4xf32> to vector<128x4xf32>
    %c0_75 = arith.constant 0 : index
    %c0_76 = arith.constant 0 : index
    %167 = vector.load %arg9[%c0_75, %c0_76] : memref<4x128xf32, #tpu.memory_space<vmem>>, vector<4x128xf32>
    %cst_77 = arith.constant dense<0.000000e+00> : vector<128x128xf32>
    %168 = tpu.matmul %166, %167, %cst_77 {dimension_numbers = #tpu.dot_dimension_numbers<[1], [0], [0], [1], [0, 0, 1, 1], [], []>} : vector<128x4xf32>, vector<4x128xf32>, vector<128x128xf32> -> vector<128x128xf32>
    %169 = arith.addf %162, %168 : vector<128x128xf32>
    %170 = vector.shape_cast %169 : vector<128x128xf32> to vector<8x16x128xf32>
    %c0_78 = arith.constant 0 : index
    %c0_79 = arith.constant 0 : index
    %c0_80 = arith.constant 0 : index
    %c0_81 = arith.constant 0 : index
    %171 = vector.load %arg10[%c0_78, %c0_79, %c0_80, %c0_81] : memref<1x8x16x128xf32, #tpu.memory_space<vmem>>, vector<1x8x16x128xf32>
    %172 = vector.shape_cast %171 : vector<1x8x16x128xf32> to vector<8x16x128xf32>
    %173 = vector.shape_cast %170 : vector<8x16x128xf32> to vector<1x8x16x128xf32>
    tpu.vector_store %arg10[%c0_78, %c0_79, %c0_80, %c0_81], %173 {strides = array<i32>} : memref<1x8x16x128xf32, #tpu.memory_space<vmem>>, vector<1x8x16x128xf32>,
    return
  }
  func.func @transform_0(%arg0: i32, %arg1: i32) -> (i32, i32, i32, i32) {
    %c0_i32 = arith.constant 0 : i32
    %c0_i32_0 = arith.constant 0 : i32
    %c0_i32_1 = arith.constant 0 : i32
    %c0_i32_2 = arith.constant 0 : i32
    return %arg0, %c0_i32, %c0_i32_0, %c0_i32_1 : i32, i32, i32, i32
  }
  func.func @transform_1(%arg0: i32, %arg1: i32) -> (i32, i32) {
    %c0_i32 = arith.constant 0 : i32
    %c0_i32_0 = arith.constant 0 : i32
    %c0_i32_1 = arith.constant 0 : i32
    return %c0_i32, %c0_i32_0 : i32, i32
  }
  func.func @transform_2(%arg0: i32, %arg1: i32) -> (i32, i32) {
    %c0_i32 = arith.constant 0 : i32
    %c0_i32_0 = arith.constant 0 : i32
    %c0_i32_1 = arith.constant 0 : i32
    return %c0_i32, %c0_i32_0 : i32, i32
  }
  func.func @transform_3(%arg0: i32, %arg1: i32) -> (i32, i32) {
    %c0_i32 = arith.constant 0 : i32
    %c0_i32_0 = arith.constant 0 : i32
    %c0_i32_1 = arith.constant 0 : i32
    return %c0_i32, %c0_i32_0 : i32, i32
  }
  func.func @transform_4(%arg0: i32, %arg1: i32) -> (i32, i32) {
    %c0_i32 = arith.constant 0 : i32
    %c0_i32_0 = arith.constant 0 : i32
    %c0_i32_1 = arith.constant 0 : i32
    return %c0_i32, %c0_i32_0 : i32, i32
  }
  func.func @transform_5(%arg0: i32, %arg1: i32) -> (i32, i32) {
    %c0_i32 = arith.constant 0 : i32
    %c0_i32_0 = arith.constant 0 : i32
    %c0_i32_1 = arith.constant 0 : i32
    return %c0_i32, %c0_i32_0 : i32, i32
  }
  func.func @transform_6(%arg0: i32, %arg1: i32) -> (i32, i32) {
    %c0_i32 = arith.constant 0 : i32
    %c0_i32_0 = arith.constant 0 : i32
    %c0_i32_1 = arith.constant 0 : i32
    return %c0_i32, %c0_i32_0 : i32, i32
  }
  func.func @transform_7(%arg0: i32, %arg1: i32) -> (i32, i32) {
    %c0_i32 = arith.constant 0 : i32
    %c0_i32_0 = arith.constant 0 : i32
    %c0_i32_1 = arith.constant 0 : i32
    return %c0_i32, %c0_i32_0 : i32, i32
  }
  func.func @transform_8(%arg0: i32, %arg1: i32) -> (i32, i32, i32, i32) {
    %c0_i32 = arith.constant 0 : i32
    %c0_i32_0 = arith.constant 0 : i32
    %c0_i32_1 = arith.constant 0 : i32
    return %arg0, %arg1, %c0_i32, %c0_i32_0 : i32, i32, i32, i32
  }
}

</mosaic_0001>

<llo_original>
// kernel: conv2_unit_forward.1
$region0: #{conv2_unit_forward.1}
  #allocation0 [shape = 'u32[]', space=smem, size = 0x4, offset = 0x4, fixed_abs, tag = 'smem constant byte address 0x4 - core index']
  #allocation1 [shape = 'u32[144,128]{1,0:T(1,128)}', space=vmem, size = 0x12000, scoped, tag = 'internal scratch']
  %s0 = inlined_call_operand.vmem [shape: f32[2,16,16,4], index: 0, kind: input, shape index: {}]
  %s1 = inlined_call_operand.vmem [shape: f32[4,128], index: 1, kind: input, shape index: {}]
  %s2 = inlined_call_operand.vmem [shape: f32[1,128], index: 2, kind: input, shape index: {}]
  %s3 = inlined_call_operand.vmem [shape: f32[9,128], index: 3, kind: input, shape index: {}]
  %s4 = inlined_call_operand.vmem [shape: f32[1,128], index: 4, kind: input, shape index: {}]
  %s5 = inlined_call_operand.vmem [shape: f32[128,128], index: 5, kind: input, shape index: {}]
  %s6 = inlined_call_operand.vmem [shape: f32[1,128], index: 6, kind: input, shape index: {}]
  %s7 = inlined_call_operand.vmem [shape: f32[4,128], index: 7, kind: input, shape index: {}]
  %s8 = inlined_call_operand.vmem [shape: f32[2,16,16,128], index: 8, kind: output, shape index: {}]
  %s9 = sld [smem:[#allocation0]]
  $region65: #{conv2_unit_forward.1} parent=0
    _
  %s11 = ssub.s32 1, %s9
  %s12 = scalar_select 0, %s11, %s9
  loop: start=0, step=1, limit=6
  $region2: #{conv2_unit_forward.1} parent=0 // loop_pre_header
    _
  $region3: #{conv2_unit_forward.1} parent=0 // loop_header
    %s14 = sphi 0, %s18
    %p15 = scmp.ge.s32.totalorder %s14, 6
    %s21 = sphi 0, %s33
    %s22 = sphi 0, %s29
    %s23 = sphi 0, %s21
    %s24 = sphi 0, %s22
    %s25 = sphi 0, %s23
    %s26 = sphi 0, %s24
    %s36 = sphi 0, %s38
    %s39 = sphi 0, %s36
    %s40 = sphi 0, %s39
    %s56 = sphi 0, %s40
    %s60 = sphi 0, %s60
    %s62 = sphi 0, %s60
    %s63 = sphi 0, %s62
    %s77 = sphi 0, %s63
    %s81 = sphi 0, %s81
    %s83 = sphi 0, %s81
    %s84 = sphi 0, %s83
    %s98 = sphi 0, %s84
    %s102 = sphi 0, %s102
    %s104 = sphi 0, %s102
    %s105 = sphi 0, %s104
    %s119 = sphi 0, %s105
    %s123 = sphi 0, %s123
    %s125 = sphi 0, %s123
    %s126 = sphi 0, %s125
    %s140 = sphi 0, %s126
    %s144 = sphi 0, %s144
    %s146 = sphi 0, %s144
    %s147 = sphi 0, %s146
    %s161 = sphi 0, %s147
    %s165 = sphi 0, %s165
    %s167 = sphi 0, %s165
    %s168 = sphi 0, %s167
    %s182 = sphi 0, %s168
    %s186 = sphi 0, %s186
    %s188 = sphi 0, %s186
    %s189 = sphi 0, %s188
    %s203 = sphi 0, %s189
    %s211 = sphi 0, %s213
    %s214 = sphi 0, %s211
    %s215 = sphi 0, %s214
    %s231 = sphi 0, %s215
  $region4: #{conv2_unit_forward.1} parent=0 // loop_header_branch
    %17 = sbr.rel (%p15) target = $region8
  $region5: #{conv2_unit_forward.1} parent=0 // loop_body
    %s19 = ssub.s32 %s14, 1
    %s20 = ssub.s32 %s14, 2
    %s27 = sadd.s32 1, %s22
    %p28 = scmp.ge.s32.totalorder %s27, 2
    %s29 = scalar_select %p28, 0, %s27
    %s30 = sadd.s32 1, %s21
    %s31 = scalar_select %p28, %s30, %s21
    %p32 = scmp.ge.s32.totalorder %s31, 2
    %s33 = scalar_select %p32, 0, %s31
    %s34 = ssub.s32 %s21, %s33
    %p35 = scmp.eq.s32.totalorder %s34, 0
    %s37 = sadd.s32 %s36, 1
    %s38 = scalar_select %p35, %s36, %s37
    %p41 = pneg %p35
    %p42 = scmp.eq.s32.totalorder %s14, 3
    %p43 = por %p41, %p42
    %p44 = scmp.ne.s32.totalorder %s36, %s39
    %p45 = scmp.eq.s32.totalorder %s14, 0
    %p46 = por %p44, %p45
    %p47 = scmp.ne.s32.totalorder %s36, %s39
    %p48 = scmp.eq.s32.totalorder %s19, 3
    %p49 = por %p47, %p48
    %p50 = scmp.ne.s32.totalorder %s39, %s40
    %p51 = scmp.eq.s32.totalorder %s19, 0
    %p52 = por %p50, %p51
    %p53 = scmp.ne.s32.totalorder %s39, %s40
    %p54 = scmp.eq.s32.totalorder %s20, 3
    %p55 = por %p53, %p54
    %p57 = scmp.ne.s32.totalorder %s40, %s56
    %p58 = scmp.eq.s32.totalorder %s20, 0
    %p59 = por %p57, %p58
    %s61 = sadd.s32 %s60, 1
    %p64 = scmp.eq.s32.totalorder %s14, 3
    %p65 = scmp.ne.s32.totalorder %s60, %s62
    %p66 = scmp.eq.s32.totalorder %s14, 0
    %p67 = por %p65, %p66
    %p68 = scmp.ne.s32.totalorder %s60, %s62
    %p69 = scmp.eq.s32.totalorder %s19, 3
    %p70 = por %p68, %p69
    %p71 = scmp.ne.s32.totalorder %s62, %s63
    %p72 = scmp.eq.s32.totalorder %s19, 0
    %p73 = por %p71, %p72
    %p74 = scmp.ne.s32.totalorder %s62, %s63
    %p75 = scmp.eq.s32.totalorder %s20, 3
    %p76 = por %p74, %p75
    %p78 = scmp.ne.s32.totalorder %s63, %s77
    %p79 = scmp.eq.s32.totalorder %s20, 0
    %p80 = por %p78, %p79
    %s82 = sadd.s32 %s81, 1
    %p85 = scmp.eq.s32.totalorder %s14, 3
    %p86 = scmp.ne.s32.totalorder %s81, %s83
    %p87 = scmp.eq.s32.totalorder %s14, 0
    %p88 = por %p86, %p87
    %p89 = scmp.ne.s32.totalorder %s81, %s83
    %p90 = scmp.eq.s32.totalorder %s19, 3
    %p91 = por %p89, %p90
    %p92 = scmp.ne.s32.totalorder %s83, %s84
    %p93 = scmp.eq.s32.totalorder %s19, 0
    %p94 = por %p92, %p93
    %p95 = scmp.ne.s32.totalorder %s83, %s84
    %p96 = scmp.eq.s32.totalorder %s20, 3
    %p97 = por %p95, %p96
    %p99 = scmp.ne.s32.totalorder %s84, %s98
    %p100 = scmp.eq.s32.totalorder %s20, 0
    %p101 = por %p99, %p100
    %s103 = sadd.s32 %s102, 1
    %p106 = scmp.eq.s32.totalorder %s14, 3
    %p107 = scmp.ne.s32.totalorder %s102, %s104
    %p108 = scmp.eq.s32.totalorder %s14, 0
    %p109 = por %p107, %p108
    %p110 = scmp.ne.s32.totalorder %s102, %s104
    %p111 = scmp.eq.s32.totalorder %s19, 3
    %p112 = por %p110, %p111
    %p113 = scmp.ne.s32.totalorder %s104, %s105
    %p114 = scmp.eq.s32.totalorder %s19, 0
    %p115 = por %p113, %p114
    %p116 = scmp.ne.s32.totalorder %s104, %s105
    %p117 = scmp.eq.s32.totalorder %s20, 3
    %p118 = por %p116, %p117
    %p120 = scmp.ne.s32.totalorder %s105, %s119
    %p121 = scmp.eq.s32.totalorder %s20, 0
    %p122 = por %p120, %p121
    %s124 = sadd.s32 %s123, 1
    %p127 = scmp.eq.s32.totalorder %s14, 3
    %p128 = scmp.ne.s32.totalorder %s123, %s125
    %p129 = scmp.eq.s32.totalorder %s14, 0
    %p130 = por %p128, %p129
    %p131 = scmp.ne.s32.totalorder %s123, %s125
    %p132 = scmp.eq.s32.totalorder %s19, 3
    %p133 = por %p131, %p132
    %p134 = scmp.ne.s32.totalorder %s125, %s126
    %p135 = scmp.eq.s32.totalorder %s19, 0
    %p136 = por %p134, %p135
    %p137 = scmp.ne.s32.totalorder %s125, %s126
    %p138 = scmp.eq.s32.totalorder %s20, 3
    %p139 = por %p137, %p138
    %p141 = scmp.ne.s32.totalorder %s126, %s140
    %p142 = scmp.eq.s32.totalorder %s20, 0
    %p143 = por %p141, %p142
    %s145 = sadd.s32 %s144, 1
    %p148 = scmp.eq.s32.totalorder %s14, 3
    %p149 = scmp.ne.s32.totalorder %s144, %s146
    %p150 = scmp.eq.s32.totalorder %s14, 0
    %p151 = por %p149, %p150
    %p152 = scmp.ne.s32.totalorder %s144, %s146
    %p153 = scmp.eq.s32.totalorder %s19, 3
    %p154 = por %p152, %p153
    %p155 = scmp.ne.s32.totalorder %s146, %s147
    %p156 = scmp.eq.s32.totalorder %s19, 0
    %p157 = por %p155, %p156
    %p158 = scmp.ne.s32.totalorder %s146, %s147
    %p159 = scmp.eq.s32.totalorder %s20, 3
    %p160 = por %p158, %p159
    %p162 = scmp.ne.s32.totalorder %s147, %s161
    %p163 = scmp.eq.s32.totalorder %s20, 0
    %p164 = por %p162, %p163
    %s166 = sadd.s32 %s165, 1
    %p169 = scmp.eq.s32.totalorder %s14, 3
    %p170 = scmp.ne.s32.totalorder %s165, %s167
    %p171 = scmp.eq.s32.totalorder %s14, 0
    %p172 = por %p170, %p171
    %p173 = scmp.ne.s32.totalorder %s165, %s167
    %p174 = scmp.eq.s32.totalorder %s19, 3
    %p175 = por %p173, %p174
    %p176 = scmp.ne.s32.totalorder %s167, %s168
    %p177 = scmp.eq.s32.totalorder %s19, 0
    %p178 = por %p176, %p177
    %p179 = scmp.ne.s32.totalorder %s167, %s168
    %p180 = scmp.eq.s32.totalorder %s20, 3
    %p181 = por %p179, %p180
    %p183 = scmp.ne.s32.totalorder %s168, %s182
    %p184 = scmp.eq.s32.totalorder %s20, 0
    %p185 = por %p183, %p184
    %s187 = sadd.s32 %s186, 1
    %p190 = scmp.eq.s32.totalorder %s14, 3
    %p191 = scmp.ne.s32.totalorder %s186, %s188
    %p192 = scmp.eq.s32.totalorder %s14, 0
    %p193 = por %p191, %p192
    %p194 = scmp.ne.s32.totalorder %s186, %s188
    %p195 = scmp.eq.s32.totalorder %s19, 3
    %p196 = por %p194, %p195
    %p197 = scmp.ne.s32.totalorder %s188, %s189
    %p198 = scmp.eq.s32.totalorder %s19, 0
    %p199 = por %p197, %p198
    %p200 = scmp.ne.s32.totalorder %s188, %s189
    %p201 = scmp.eq.s32.totalorder %s20, 3
    %p202 = por %p200, %p201
    %p204 = scmp.ne.s32.totalorder %s189, %s203
    %p205 = scmp.eq.s32.totalorder %s20, 0
    %p206 = por %p204, %p205
    %s207 = ssub.s32 %s21, %s33
    %s208 = ssub.s32 %s22, %s29
    %s209 = sor.u32 %s207, %s208
    %p210 = scmp.eq.s32.totalorder %s209, 0
    %s212 = sadd.s32 %s211, 1
    %s213 = scalar_select %p210, %s211, %s212
    %p216 = pneg %p210
    %p217 = scmp.eq.s32.totalorder %s14, 3
    %p218 = por %p216, %p217
    %p219 = scmp.ne.s32.totalorder %s211, %s214
    %p220 = scmp.eq.s32.totalorder %s14, 0
    %p221 = por %p219, %p220
    %p222 = scmp.ne.s32.totalorder %s211, %s214
    %p223 = scmp.eq.s32.totalorder %s19, 3
    %p224 = por %p222, %p223
    %p225 = scmp.ne.s32.totalorder %s214, %s215
    %p226 = scmp.eq.s32.totalorder %s19, 0
    %p227 = por %p225, %p226
    %p228 = scmp.ne.s32.totalorder %s214, %s215
    %p229 = scmp.eq.s32.totalorder %s20, 3
    %p230 = por %p228, %p229
    %p232 = scmp.ne.s32.totalorder %s215, %s231
    %p233 = scmp.eq.s32.totalorder %s20, 0
    %p234 = por %p232, %p233
    %p235 = scmp.le.s32.totalorder 1, %s14
    %p236 = scmp.lt.s32.totalorder %s14, 5
    %p237 = pnand %p235, %p236
    %p238 = pneg %p237
    // Predicated region
    $region9: #{conv2_unit_forward.1} parent=5 // pred_check
      _
    $region10: #{conv2_unit_forward.1} parent=5 // pred_check_branch
      %240 = sbr.rel (%p237) target = $region12
    $region11: #{conv2_unit_forward.1} parent=5 // pred_region
      %s241 = ssub.s32 %s14, 1
      // Predicated region
      $region13: #{conv2_unit_forward.1} parent=11 // pred_check
        %p242 = pneg %p73
      $region14: #{conv2_unit_forward.1} parent=11 // pred_check_branch
        %244 = sbr.rel (%p242) target = $region16
      $region15: #{conv2_unit_forward.1} parent=11 // pred_region
        _
      $region16: #{conv2_unit_forward.1} parent=11 // pred_fallthru
        _
      // Predicated region
      $region17: #{conv2_unit_forward.1} parent=11 // pred_check
        %p245 = pneg %p94
      $region18: #{conv2_unit_forward.1} parent=11 // pred_check_branch
        %247 = sbr.rel (%p245) target = $region20
      $region19: #{conv2_unit_forward.1} parent=11 // pred_region
        _
      $region20: #{conv2_unit_forward.1} parent=11 // pred_fallthru
        _
      // Predicated region
      $region21: #{conv2_unit_forward.1} parent=11 // pred_check
        %p248 = pneg %p115
      $region22: #{conv2_unit_forward.1} parent=11 // pred_check_branch
        %250 = sbr.rel (%p248) target = $region24
      $region23: #{conv2_unit_forward.1} parent=11 // pred_region
        _
      $region24: #{conv2_unit_forward.1} parent=11 // pred_fallthru
        _
      // Predicated region
      $region25: #{conv2_unit_forward.1} parent=11 // pred_check
        %p251 = pneg %p136
      $region26: #{conv2_unit_forward.1} parent=11 // pred_check_branch
        %253 = sbr.rel (%p251) target = $region28
      $region27: #{conv2_unit_forward.1} parent=11 // pred_region
        _
      $region28: #{conv2_unit_forward.1} parent=11 // pred_fallthru
        _
      // Predicated region
      $region29: #{conv2_unit_forward.1} parent=11 // pred_check
        %p254 = pneg %p157
      $region30: #{conv2_unit_forward.1} parent=11 // pred_check_branch
        %256 = sbr.rel (%p254) target = $region32
      $region31: #{conv2_unit_forward.1} parent=11 // pred_region
        _
      $region32: #{conv2_unit_forward.1} parent=11 // pred_fallthru
        _
      // Predicated region
      $region33: #{conv2_unit_forward.1} parent=11 // pred_check
        %p257 = pneg %p178
      $region34: #{conv2_unit_forward.1} parent=11 // pred_check_branch
        %259 = sbr.rel (%p257) target = $region36
      $region35: #{conv2_unit_forward.1} parent=11 // pred_region
        _
      $region36: #{conv2_unit_forward.1} parent=11 // pred_fallthru
        _
      // Predicated region
      $region37: #{conv2_unit_forward.1} parent=11 // pred_check
        %p260 = pneg %p199
      $region38: #{conv2_unit_forward.1} parent=11 // pred_check_branch
        %262 = sbr.rel (%p260) target = $region40
      $region39: #{conv2_unit_forward.1} parent=11 // pred_region
        _
      $region40: #{conv2_unit_forward.1} parent=11 // pred_fallthru
        _
    $region12: #{conv2_unit_forward.1} parent=5 // pred_fallthru
      _
    %p263 = scmp.lt.s32.totalorder %s14, 4
    // Predicated region
    $region41: #{conv2_unit_forward.1} parent=5 // pred_check
      %p264 = pneg %p263
    $region42: #{conv2_unit_forward.1} parent=5 // pred_check_branch
      %266 = sbr.rel (%p264) target = $region44
    $region43: #{conv2_unit_forward.1} parent=5 // pred_region
      // Predicated region
      $region45: #{conv2_unit_forward.1} parent=43 // pred_check
        %p267 = pneg %p46
      $region46: #{conv2_unit_forward.1} parent=43 // pred_check_branch
        %269 = sbr.rel (%p267) target = $region48
      $region47: #{conv2_unit_forward.1} parent=43 // pred_region
        %p270 = scmp.lt.s32.totalorder %s21, 1
        %s271 = scalar_select %p270, %s21, 1
        %s272 = smul.addr %s271, 32
        %s273 = smul.addr %s272, 8
        %s274 = scalar_lea.vmem %s0, %s273
      $region48: #{conv2_unit_forward.1} parent=43 // pred_fallthru
        _
    $region44: #{conv2_unit_forward.1} parent=5 // pred_fallthru
      _
    %p275 = scmp.le.s32.totalorder 1, %s14
    %p276 = scmp.lt.s32.totalorder %s14, 5
    %p277 = pnand %p275, %p276
    %p278 = pneg %p277
    // Predicated region
    $region49: #{conv2_unit_forward.1} parent=5 // pred_check
      _
    $region50: #{conv2_unit_forward.1} parent=5 // pred_check_branch
      %280 = sbr.rel (%p277) target = $region52
    $region51: #{conv2_unit_forward.1} parent=5 // pred_region
      %s281 = ssub.s32 %s14, 1
      %p282 = scmp.lt.s32.totalorder %s23, 1
      %s283 = scalar_select %p282, %s23, 1
      %s284 = smul.addr %s283, 32
      %s285 = smul.addr %s284, 8
      %s286 = scalar_lea.vmem %s0, %s285
      %p287 = pneg %p52
      %p288 = pneg %p49
      %p289 = pneg %p73
      %p290 = pneg %p70
      %p291 = pneg %p94
      %p292 = pneg %p91
      %p293 = pneg %p115
      %p294 = pneg %p112
      %p295 = pneg %p136
      %p296 = pneg %p133
      %p297 = pneg %p157
      %p298 = pneg %p154
      %p299 = pneg %p178
      %p300 = pneg %p175
      %p301 = pneg %p199
      %p302 = pneg %p196
      %p303 = pneg %p227
      %p304 = pneg %p224
      %s305 = smul.u32 8, %s24
      %p306 = scmp.lt.s32.totalorder %s23, 1
      %s307 = scalar_select %p306, %s23, 1
      %p308 = scmp.lt.s32.totalorder %s305, 15
      %s309 = scalar_select %p308, %s305, 15
      %s310 = smul.addr %s309, 2
      %s311 = smul.addr %s307, 32
      %s312 = sadd.s32 %s310, %s311
      %s313 = smul.addr %s312, 8
      %s314 = scalar_lea.vmem %s8, %s313
      %p315 = scmp.lt.s32.totalorder %s23, 1
      %s316 = scalar_select %p315, %s23, 1
      %s317 = smul.addr %s316, 32
      %s318 = smul.addr %s317, 8
      %s319 = scalar_lea.vmem %s0, %s318
      %s320 = smul.u32 8, %s24
      %p321 = scmp.lt.s32.totalorder %s23, 1
      %s322 = scalar_select %p321, %s23, 1
      %p323 = scmp.lt.s32.totalorder %s320, 15
      %s324 = scalar_select %p323, %s320, 15
      %s325 = smul.addr %s324, 2
      %s326 = smul.addr %s322, 32
      %s327 = sadd.s32 %s325, %s326
      %s328 = smul.addr %s327, 8
      %s329 = scalar_lea.vmem %s8, %s328
      %s330 = smul.u32 8, %s24
      %s331 = smul.u32 %s24, 8
      %s332 = ssub.s32 %s331, 1
      %p333 = scmp.gt.s32.totalorder %s332, 0
      %s334 = scalar_select %p333, %s332, 0
      %p335 = scmp.lt.s32.totalorder %s334, 15
      %s336 = scalar_select %p335, %s334, 15
      %s337 = smul.u32 %s336, 16
      %s338 = scalar_lea.vmem %s319, %s337
      %v339 = vld [vmem:[%s338] sm:$0xff]
      %v340 = vld [vmem:[%s338 + $0x8] sm:$0xff]
      %p341 = scmp.gt.s32.totalorder %s331, 0
      %s342 = scalar_select %p341, %s331, 0
      %p343 = scmp.lt.s32.totalorder %s342, 15
      %s344 = scalar_select %p343, %s342, 15
      %s345 = smul.u32 %s344, 16
      %s346 = scalar_lea.vmem %s319, %s345
      %v347 = vld [vmem:[%s346] sm:$0xff]
      %v348 = vld [vmem:[%s346 + $0x8] sm:$0xff]
      %s349 = sadd.s32 %s331, 1
      %p350 = scmp.gt.s32.totalorder %s349, 0
      %s351 = scalar_select %p350, %s349, 0
      %p352 = scmp.lt.s32.totalorder %s351, 15
      %s353 = scalar_select %p352, %s351, 15
      %s354 = smul.u32 %s353, 16
      %s355 = scalar_lea.vmem %s319, %s354
      %v356 = vld [vmem:[%s355] sm:$0xff]
      %v357 = vld [vmem:[%s355 + $0x8] sm:$0xff]
      %s358 = sadd.s32 %s331, 2
      %p359 = scmp.gt.s32.totalorder %s358, 0
      %s360 = scalar_select %p359, %s358, 0
      %p361 = scmp.lt.s32.totalorder %s360, 15
      %s362 = scalar_select %p361, %s360, 15
      %s363 = smul.u32 %s362, 16
      %s364 = scalar_lea.vmem %s319, %s363
      %v365 = vld [vmem:[%s364] sm:$0xff]
      %v366 = vld [vmem:[%s364 + $0x8] sm:$0xff]
      %s367 = sadd.s32 %s331, 3
      %p368 = scmp.gt.s32.totalorder %s367, 0
      %s369 = scalar_select %p368, %s367, 0
      %p370 = scmp.lt.s32.totalorder %s369, 15
      %s371 = scalar_select %p370, %s369, 15
      %s372 = smul.u32 %s371, 16
      %s373 = scalar_lea.vmem %s319, %s372
      %v374 = vld [vmem:[%s373] sm:$0xff]
      %v375 = vld [vmem:[%s373 + $0x8] sm:$0xff]
      %s376 = sadd.s32 %s331, 4
      %p377 = scmp.gt.s32.totalorder %s376, 0
      %s378 = scalar_select %p377, %s376, 0
      %p379 = scmp.lt.s32.totalorder %s378, 15
      %s380 = scalar_select %p379, %s378, 15
      %s381 = smul.u32 %s380, 16
      %s382 = scalar_lea.vmem %s319, %s381
      %v383 = vld [vmem:[%s382] sm:$0xff]
      %v384 = vld [vmem:[%s382 + $0x8] sm:$0xff]
      %s385 = sadd.s32 %s331, 5
      %p386 = scmp.gt.s32.totalorder %s385, 0
      %s387 = scalar_select %p386, %s385, 0
      %p388 = scmp.lt.s32.totalorder %s387, 15
      %s389 = scalar_select %p388, %s387, 15
      %s390 = smul.u32 %s389, 16
      %s391 = scalar_lea.vmem %s319, %s390
      %v392 = vld [vmem:[%s391] sm:$0xff]
      %v393 = vld [vmem:[%s391 + $0x8] sm:$0xff]
      %s394 = sadd.s32 %s331, 6
      %p395 = scmp.gt.s32.totalorder %s394, 0
      %s396 = scalar_select %p395, %s394, 0
      %p397 = scmp.lt.s32.totalorder %s396, 15
      %s398 = scalar_select %p397, %s396, 15
      %s399 = smul.u32 %s398, 16
      %s400 = scalar_lea.vmem %s319, %s399
      %v401 = vld [vmem:[%s400] sm:$0xff]
      %v402 = vld [vmem:[%s400 + $0x8] sm:$0xff]
      %s403 = sadd.s32 %s331, 7
      %p404 = scmp.gt.s32.totalorder %s403, 0
      %s405 = scalar_select %p404, %s403, 0
      %p406 = scmp.lt.s32.totalorder %s405, 15
      %s407 = scalar_select %p406, %s405, 15
      %s408 = smul.u32 %s407, 16
      %s409 = scalar_lea.vmem %s319, %s408
      %v410 = vld [vmem:[%s409] sm:$0xff]
      %v411 = vld [vmem:[%s409 + $0x8] sm:$0xff]
      %s412 = sadd.s32 %s331, 8
      %p413 = scmp.gt.s32.totalorder %s412, 0
      %s414 = scalar_select %p413, %s412, 0
      %p415 = scmp.lt.s32.totalorder %s414, 15
      %s416 = scalar_select %p415, %s414, 15
      %s417 = smul.u32 %s416, 16
      %s418 = scalar_lea.vmem %s319, %s417
      %v419 = vld [vmem:[%s418] sm:$0xff]
      %v420 = vld [vmem:[%s418 + $0x8] sm:$0xff]
      %v421 = vld [vmem:[%s1] sm:$0xf]
      %v422 = vld [vmem:[%s2] sm:$0x1]
      %v424 = vlaneseq
      %v425 = vshrl.u32 %v424, 7
      %v426 = vsub.s32 0, %v425
      %v427 = vrot.slane %v422, %v426
      %vm429 = vcmask 31744
      %v431 = vsel %vm429, %v339, 0
      %v434 = vsel %vm429, %v340, 0
      %v437 = vsel %vm429, %v347, 0
      %v440 = vsel %vm429, %v348, 0
      %v443 = vsel %vm429, %v356, 0
      %v446 = vsel %vm429, %v357, 0
      %v449 = vsel %vm429, %v365, 0
      %v452 = vsel %vm429, %v366, 0
      %v455 = vsel %vm429, %v374, 0
      %v458 = vsel %vm429, %v375, 0
      %v461 = vsel %vm429, %v383, 0
      %v464 = vsel %vm429, %v384, 0
      %v467 = vsel %vm429, %v392, 0
      %v470 = vsel %vm429, %v393, 0
      %v473 = vsel %vm429, %v401, 0
      %v476 = vsel %vm429, %v402, 0
      %v479 = vsel %vm429, %v410, 0
      %v482 = vsel %vm429, %v411, 0
      %v485 = vsel %vm429, %v419, 0
      %v488 = vsel %vm429, %v420, 0
      %vm490 = vcmask 1043456
      %v492 = vsel %vm490, %v421, 0
      %494 = vmatprep.subr.mxu0 0.0
      %495 = vmatpush1.msra.mxu0 0.0
      %496 = vmatprep.subr.mxu0 0.0
      %497 = vmatpush1.msra.mxu0 0.0
      %498 = vmatprep.subr.mxu0 0.0
      %499 = vmatpush1.msra.mxu0 0.0
      %500 = vmatprep.subr.mxu0 0.0
      %501 = vmatpush1.msra.mxu0 0.0
      %502 = vmatprep.subr.mxu0 0.0
      %503 = vmatpush1.msra.mxu0 0.0
      %504 = vmatprep.subr.mxu0 0.0
      %505 = vmatpush1.msra.mxu0 0.0
      %506 = vmatprep.subr.mxu0 0.0
      %507 = vmatpush1.msra.mxu0 0.0
      %508 = vmatprep.subr.mxu0 0.0
      %509 = vmatpush1.msra.mxu0 0.0
      %510 = vmatprep.subr.mxu0 0.0
      %511 = vmatpush1.msra.mxu0 0.0
      %512 = vmatprep.subr.mxu0 0.0
      %513 = vmatpush1.msra.mxu0 0.0
      %514 = vmatprep.subr.mxu0 0.0
      %515 = vmatpush1.msra.mxu0 0.0
      %516 = vmatprep.subr.mxu0 0.0
      %517 = vmatpush1.msra.mxu0 0.0
      %518 = vmatprep.subr.mxu0 0.0
      %519 = vmatpush1.msra.mxu0 0.0
      %520 = vmatprep.subr.mxu0 0.0
      %521 = vmatpush1.msra.mxu0 0.0
      %522 = vmatprep.subr.mxu0 0.0
      %523 = vmatpush1.msra.mxu0 0.0
      %524 = vmatprep.subr.mxu0 0.0
      %525 = vmatpush1.msra.mxu0 %v492
      %526 = vmatprep.subr.mxu0 0.0
      %527 = vmatpush2.msra.mxu0 0.0
      %528 = vmatprep.subr.mxu0 0.0
      %529 = vmatpush2.msra.mxu0 0.0
      %530 = vmatprep.subr.mxu0 0.0
      %531 = vmatpush2.msra.mxu0 0.0
      %532 = vmatprep.subr.mxu0 0.0
      %533 = vmatpush2.msra.mxu0 0.0
      %534 = vmatprep.subr.mxu0 0.0
      %535 = vmatpush2.msra.mxu0 0.0
      %536 = vmatprep.subr.mxu0 0.0
      %537 = vmatpush2.msra.mxu0 0.0
      %538 = vmatprep.subr.mxu0 0.0
      %539 = vmatpush2.msra.mxu0 0.0
      %540 = vmatprep.subr.mxu0 0.0
      %541 = vmatpush2.msra.mxu0 0.0
      %542 = vmatprep.subr.mxu0 0.0
      %543 = vmatpush2.msra.mxu0 0.0
      %544 = vmatprep.subr.mxu0 0.0
      %545 = vmatpush2.msra.mxu0 0.0
      %546 = vmatprep.subr.mxu0 0.0
      %547 = vmatpush2.msra.mxu0 0.0
      %548 = vmatprep.subr.mxu0 0.0
      %549 = vmatpush2.msra.mxu0 0.0
      %550 = vmatprep.subr.mxu0 0.0
      %551 = vmatpush2.msra.mxu0 0.0
      %552 = vmatprep.subr.mxu0 0.0
      %553 = vmatpush2.msra.mxu0 0.0
      %554 = vmatprep.subr.mxu0 0.0
      %555 = vmatpush2.msra.mxu0 0.0
      %556 = vmatprep.subr.mxu0 0.0
      %557 = vmatpush2.msra.mxu0 0.0
      %558 = vmatprep.mubr.f32.mxu0 0.0
      %559 = vmatmul.mubr.f32.gmra.mxu0 %v431
      %v560 = vpop.f32.mrf.mxu0
      %v561 = vadd.f32 %v427, %v560
      %v562 = vpop.f32.mrf.mxu0
      %563 = vmatprep.mubr.f32.mxu0 0.0
      %564 = vmatmul.mubr.f32.gmra.mxu0 %v434
      %v565 = vpop.f32.mrf.mxu0
      %v566 = vadd.f32 %v427, %v565
      %v567 = vpop.f32.mrf.mxu0
      %568 = vmatprep.mubr.f32.mxu0 0.0
      %569 = vmatmul.mubr.f32.gmra.mxu0 %v437
      %v570 = vpop.f32.mrf.mxu0
      %v571 = vadd.f32 %v427, %v570
      %v572 = vpop.f32.mrf.mxu0
      %573 = vmatprep.mubr.f32.mxu0 0.0
      %574 = vmatmul.mubr.f32.gmra.mxu0 %v440
      %v575 = vpop.f32.mrf.mxu0
      %v576 = vadd.f32 %v427, %v575
      %v577 = vpop.f32.mrf.mxu0
      %578 = vmatprep.mubr.f32.mxu0 0.0
      %579 = vmatmul.mubr.f32.gmra.mxu0 %v443
      %v580 = vpop.f32.mrf.mxu0
      %v581 = vadd.f32 %v427, %v580
      %v582 = vpop.f32.mrf.mxu0
      %583 = vmatprep.mubr.f32.mxu0 0.0
      %584 = vmatmul.mubr.f32.gmra.mxu0 %v446
      %v585 = vpop.f32.mrf.mxu0
      %v586 = vadd.f32 %v427, %v585
      %v587 = vpop.f32.mrf.mxu0
      %588 = vmatprep.mubr.f32.mxu0 0.0
      %589 = vmatmul.mubr.f32.gmra.mxu0 %v449
      %v590 = vpop.f32.mrf.mxu0
      %v591 = vadd.f32 %v427, %v590
      %v592 = vpop.f32.mrf.mxu0
      %593 = vmatprep.mubr.f32.mxu0 0.0
      %594 = vmatmul.mubr.f32.gmra.mxu0 %v452
      %v595 = vpop.f32.mrf.mxu0
      %v596 = vadd.f32 %v427, %v595
      %v597 = vpop.f32.mrf.mxu0
      %598 = vmatprep.mubr.f32.mxu0 0.0
      %599 = vmatmul.mubr.f32.gmra.mxu0 %v455
      %v600 = vpop.f32.mrf.mxu0
      %v601 = vadd.f32 %v427, %v600
      %v602 = vpop.f32.mrf.mxu0
      %603 = vmatprep.mubr.f32.mxu0 0.0
      %604 = vmatmul.mubr.f32.gmra.mxu0 %v458
      %v605 = vpop.f32.mrf.mxu0
      %v606 = vadd.f32 %v427, %v605
      %v607 = vpop.f32.mrf.mxu0
      %608 = vmatprep.mubr.f32.mxu0 0.0
      %609 = vmatmul.mubr.f32.gmra.mxu0 %v461
      %v610 = vpop.f32.mrf.mxu0
      %v611 = vadd.f32 %v427, %v610
      %v612 = vpop.f32.mrf.mxu0
      %613 = vmatprep.mubr.f32.mxu0 0.0
      %614 = vmatmul.mubr.f32.gmra.mxu0 %v464
      %v615 = vpop.f32.mrf.mxu0
      %v616 = vadd.f32 %v427, %v615
      %v617 = vpop.f32.mrf.mxu0
      %618 = vmatprep.mubr.f32.mxu0 0.0
      %619 = vmatmul.mubr.f32.gmra.mxu0 %v467
      %v620 = vpop.f32.mrf.mxu0
      %v621 = vadd.f32 %v427, %v620
      %v622 = vpop.f32.mrf.mxu0
      %623 = vmatprep.mubr.f32.mxu0 0.0
      %624 = vmatmul.mubr.f32.gmra.mxu0 %v470
      %v625 = vpop.f32.mrf.mxu0
      %v626 = vadd.f32 %v427, %v625
      %v627 = vpop.f32.mrf.mxu0
      %628 = vmatprep.mubr.f32.mxu0 0.0
      %629 = vmatmul.mubr.f32.gmra.mxu0 %v473
      %v630 = vpop.f32.mrf.mxu0
      %v631 = vadd.f32 %v427, %v630
      %v632 = vpop.f32.mrf.mxu0
      %633 = vmatprep.mubr.f32.mxu0 0.0
      %634 = vmatmul.mubr.f32.gmra.mxu0 %v476
      %v635 = vpop.f32.mrf.mxu0
      %v636 = vadd.f32 %v427, %v635
      %v637 = vpop.f32.mrf.mxu0
      %638 = vmatprep.mubr.f32.mxu0 0.0
      %639 = vmatmul.mubr.f32.gmra.mxu0 %v479
      %v640 = vpop.f32.mrf.mxu0
      %v641 = vadd.f32 %v427, %v640
      %v642 = vpop.f32.mrf.mxu0
      %643 = vmatprep.mubr.f32.mxu0 0.0
      %644 = vmatmul.mubr.f32.gmra.mxu0 %v482
      %v645 = vpop.f32.mrf.mxu0
      %v646 = vadd.f32 %v427, %v645
      %v647 = vpop.f32.mrf.mxu0
      %648 = vmatprep.mubr.f32.mxu0 0.0
      %649 = vmatmul.mubr.f32.gmra.mxu0 %v485
      %v650 = vpop.f32.mrf.mxu0
      %v651 = vadd.f32 %v427, %v650
      %v652 = vpop.f32.mrf.mxu0
      %653 = vmatprep.mubr.f32.mxu0 0.0
      %654 = vmatmul.mubr.f32.gmra.mxu0 %v488
      %v655 = vpop.f32.mrf.mxu0
      %v656 = vadd.f32 %v427, %v655
      %v657 = vpop.f32.mrf.mxu0
      %658 = vdwg.mxu0
      %v659 = vmax.f32 %v561, 0.0
      %v660 = vmax.f32 %v566, 0.0
      %v661 = vmax.f32 %v571, 0.0
      %v662 = vmax.f32 %v576, 0.0
      %v663 = vmax.f32 %v581, 0.0
      %v664 = vmax.f32 %v586, 0.0
      %v665 = vmax.f32 %v591, 0.0
      %v666 = vmax.f32 %v596, 0.0
      %v667 = vmax.f32 %v601, 0.0
      %v668 = vmax.f32 %v606, 0.0
      %v669 = vmax.f32 %v611, 0.0
      %v670 = vmax.f32 %v616, 0.0
      %v671 = vmax.f32 %v621, 0.0
      %v672 = vmax.f32 %v626, 0.0
      %v673 = vmax.f32 %v631, 0.0
      %v674 = vmax.f32 %v636, 0.0
      %v675 = vmax.f32 %v641, 0.0
      %v676 = vmax.f32 %v646, 0.0
      %v677 = vmax.f32 %v651, 0.0
      %v678 = vmax.f32 %v656, 0.0
      %v679 = vmin.f32 %v659, 6.0
      %v680 = vmin.f32 %v660, 6.0
      %v681 = vmin.f32 %v661, 6.0
      %v682 = vmin.f32 %v662, 6.0
      %v683 = vmin.f32 %v663, 6.0
      %v684 = vmin.f32 %v664, 6.0
      %v685 = vmin.f32 %v665, 6.0
      %v686 = vmin.f32 %v666, 6.0
      %v687 = vmin.f32 %v667, 6.0
      %v688 = vmin.f32 %v668, 6.0
      %v689 = vmin.f32 %v669, 6.0
      %v690 = vmin.f32 %v670, 6.0
      %v691 = vmin.f32 %v671, 6.0
      %v692 = vmin.f32 %v672, 6.0
      %v693 = vmin.f32 %v673, 6.0
      %v694 = vmin.f32 %v674, 6.0
      %v695 = vmin.f32 %v675, 6.0
      %v696 = vmin.f32 %v676, 6.0
      %v697 = vmin.f32 %v677, 6.0
      %v698 = vmin.f32 %v678, 6.0
      %v699 = vstv %s332
      %v700 = vadd.s32 %v699, 1
      %v701 = vadd.s32 %v699, 2
      %v702 = vadd.s32 %v699, 3
      %v703 = vadd.s32 %v699, 4
      %v704 = vadd.s32 %v699, 5
      %v705 = vadd.s32 %v699, 6
      %v706 = vadd.s32 %v699, 7
      %v707 = vadd.s32 %v699, 8
      %v708 = vadd.s32 %v699, 9
      %vm709 = vcmp.ge.s32.totalorder %v699, 0
      %vm710 = vcmp.ge.s32.totalorder %v700, 0
      %vm711 = vcmp.ge.s32.totalorder %v701, 0
      %vm712 = vcmp.ge.s32.totalorder %v702, 0
      %vm713 = vcmp.ge.s32.totalorder %v703, 0
      %vm714 = vcmp.ge.s32.totalorder %v704, 0
      %vm715 = vcmp.ge.s32.totalorder %v705, 0
      %vm716 = vcmp.ge.s32.totalorder %v706, 0
      %vm717 = vcmp.ge.s32.totalorder %v707, 0
      %vm718 = vcmp.ge.s32.totalorder %v708, 0
      %vm719 = vcmp.lt.s32.totalorder %v699, 16
      %vm720 = vcmp.lt.s32.totalorder %v700, 16
      %vm721 = vcmp.lt.s32.totalorder %v701, 16
      %vm722 = vcmp.lt.s32.totalorder %v702, 16
      %vm723 = vcmp.lt.s32.totalorder %v703, 16
      %vm724 = vcmp.lt.s32.totalorder %v704, 16
      %vm725 = vcmp.lt.s32.totalorder %v705, 16
      %vm726 = vcmp.lt.s32.totalorder %v706, 16
      %vm727 = vcmp.lt.s32.totalorder %v707, 16
      %vm728 = vcmp.lt.s32.totalorder %v708, 16
      %vm729 = vmand %vm709, %vm719
      %vm730 = vmand %vm710, %vm720
      %vm731 = vmand %vm711, %vm721
      %vm732 = vmand %vm712, %vm722
      %vm733 = vmand %vm713, %vm723
      %vm734 = vmand %vm714, %vm724
      %vm735 = vmand %vm715, %vm725
      %vm736 = vmand %vm716, %vm726
      %vm737 = vmand %vm717, %vm727
      %vm738 = vmand %vm718, %vm728
      %v739 = vsel %vm729, 1, 0
      %v740 = vsel %vm730, 1, 0
      %v741 = vsel %vm731, 1, 0
      %v742 = vsel %vm732, 1, 0
      %v743 = vsel %vm733, 1, 0
      %v744 = vsel %vm734, 1, 0
      %v745 = vsel %vm735, 1, 0
      %v746 = vsel %vm736, 1, 0
      %v747 = vsel %vm737, 1, 0
      %v748 = vsel %vm738, 1, 0
      %vm749 = vcmp.eq.s32.totalorder %v739, 1
      %vm750 = vcmp.eq.s32.totalorder %v740, 1
      %vm751 = vcmp.eq.s32.totalorder %v741, 1
      %vm752 = vcmp.eq.s32.totalorder %v742, 1
      %vm753 = vcmp.eq.s32.totalorder %v743, 1
      %vm754 = vcmp.eq.s32.totalorder %v744, 1
      %vm755 = vcmp.eq.s32.totalorder %v745, 1
      %vm756 = vcmp.eq.s32.totalorder %v746, 1
      %vm757 = vcmp.eq.s32.totalorder %v747, 1
      %vm758 = vcmp.eq.s32.totalorder %v748, 1
      %v759 = vsel %vm749, %v679, 0.0
      %v760 = vsel %vm749, %v680, 0.0
      %v761 = vsel %vm750, %v681, 0.0
      %v762 = vsel %vm750, %v682, 0.0
      %v763 = vsel %vm751, %v683, 0.0
      %v764 = vsel %vm751, %v684, 0.0
      %v765 = vsel %vm752, %v685, 0.0
      %v766 = vsel %vm752, %v686, 0.0
      %v767 = vsel %vm753, %v687, 0.0
      %v768 = vsel %vm753, %v688, 0.0
      %v769 = vsel %vm754, %v689, 0.0
      %v770 = vsel %vm754, %v690, 0.0
      %v771 = vsel %vm755, %v691, 0.0
      %v772 = vsel %vm755, %v692, 0.0
      %v773 = vsel %vm756, %v693, 0.0
      %v774 = vsel %vm756, %v694, 0.0
      %v775 = vsel %vm757, %v695, 0.0
      %v776 = vsel %vm757, %v696, 0.0
      %v777 = vsel %vm758, %v697, 0.0
      %v778 = vsel %vm758, %v698, 0.0
      %vm799 = vcmask 1040384
      %v800 = vrot.slane %v759, 7
      %v801 = vrot.slane %v760, 7
      %v802 = vsel %vm799, %v800, %v801
      %v803 = vrot.slane %v761, 7
      %v804 = vrot.slane %v762, 7
      %v805 = vsel %vm799, %v803, %v804
      %v806 = vrot.slane %v763, 7
      %v807 = vrot.slane %v764, 7
      %v808 = vsel %vm799, %v806, %v807
      %v809 = vrot.slane %v765, 7
      %v810 = vrot.slane %v766, 7
      %v811 = vsel %vm799, %v809, %v810
      %v812 = vrot.slane %v767, 7
      %v813 = vrot.slane %v768, 7
      %v814 = vsel %vm799, %v812, %v813
      %v815 = vrot.slane %v769, 7
      %v816 = vrot.slane %v770, 7
      %v817 = vsel %vm799, %v815, %v816
      %v818 = vrot.slane %v771, 7
      %v819 = vrot.slane %v772, 7
      %v820 = vsel %vm799, %v818, %v819
      %v821 = vrot.slane %v773, 7
      %v822 = vrot.slane %v774, 7
      %v823 = vsel %vm799, %v821, %v822
      %v824 = vrot.slane %v775, 7
      %v825 = vrot.slane %v776, 7
      %v826 = vsel %vm799, %v824, %v825
      %v827 = vrot.slane %v777, 7
      %v828 = vrot.slane %v778, 7
      %v829 = vsel %vm799, %v827, %v828
      %v860 = vsel %vm799, 0.0, %v800
      %v861 = vsel %vm799, 0.0, %v803
      %v862 = vsel %vm799, 0.0, %v806
      %v863 = vsel %vm799, 0.0, %v809
      %v864 = vsel %vm799, 0.0, %v812
      %v865 = vsel %vm799, 0.0, %v815
      %v866 = vsel %vm799, 0.0, %v818
      %v867 = vsel %vm799, 0.0, %v821
      %v868 = vsel %vm799, 0.0, %v824
      %v869 = vsel %vm799, 0.0, %v827
      %v870 = vsel %vm799, %v801, 0.0
      %v871 = vsel %vm799, %v804, 0.0
      %v872 = vsel %vm799, %v807, 0.0
      %v873 = vsel %vm799, %v810, 0.0
      %v874 = vsel %vm799, %v813, 0.0
      %v875 = vsel %vm799, %v816, 0.0
      %v876 = vsel %vm799, %v819, 0.0
      %v877 = vsel %vm799, %v822, 0.0
      %v878 = vsel %vm799, %v825, 0.0
      %v879 = vsel %vm799, %v828, 0.0
      %v880 = vld [vmem:[%s3] sm:$0xff]
      %v881 = vld [vmem:[%s3 + $0x8] sm:$0x1]
      %v882 = vld [vmem:[%s4] sm:$0x1]
      %v883 = vlaneseq
      %v884 = vshrl.u32 %v883, 7
      %v885 = vsub.s32 0, %v884
      %v886 = vrot.slane %v880, %v885
      %v887 = vmul.f32 %v860, %v886
      %v888 = vmul.f32 %v802, %v886
      %v889 = vmul.f32 %v861, %v886
      %v890 = vmul.f32 %v805, %v886
      %v891 = vmul.f32 %v862, %v886
      %v892 = vmul.f32 %v808, %v886
      %v893 = vmul.f32 %v863, %v886
      %v894 = vmul.f32 %v811, %v886
      %v895 = vmul.f32 %v864, %v886
      %v896 = vmul.f32 %v814, %v886
      %v897 = vmul.f32 %v865, %v886
      %v898 = vmul.f32 %v817, %v886
      %v899 = vmul.f32 %v866, %v886
      %v900 = vmul.f32 %v820, %v886
      %v901 = vmul.f32 %v867, %v886
      %v902 = vmul.f32 %v823, %v886
      %v903 = vadd.f32 %v887, 0.0
      %v904 = vadd.f32 %v888, 0.0
      %v905 = vadd.f32 %v889, 0.0
      %v906 = vadd.f32 %v890, 0.0
      %v907 = vadd.f32 %v891, 0.0
      %v908 = vadd.f32 %v892, 0.0
      %v909 = vadd.f32 %v893, 0.0
      %v910 = vadd.f32 %v894, 0.0
      %v911 = vadd.f32 %v895, 0.0
      %v912 = vadd.f32 %v896, 0.0
      %v913 = vadd.f32 %v897, 0.0
      %v914 = vadd.f32 %v898, 0.0
      %v915 = vadd.f32 %v899, 0.0
      %v916 = vadd.f32 %v900, 0.0
      %v917 = vadd.f32 %v901, 0.0
      %v918 = vadd.f32 %v902, 0.0
      %v919 = vlaneseq
      %v920 = vshrl.u32 %v919, 7
      %v921 = vsub.s32 1, %v920
      %v922 = vrot.slane %v880, %v921
      %v923 = vmul.f32 %v860, %v922
      %v924 = vmul.f32 %v802, %v922
      %v925 = vmul.f32 %v870, %v922
      %v926 = vmul.f32 %v861, %v922
      %v927 = vmul.f32 %v805, %v922
      %v928 = vmul.f32 %v871, %v922
      %v929 = vmul.f32 %v862, %v922
      %v930 = vmul.f32 %v808, %v922
      %v931 = vmul.f32 %v872, %v922
      %v932 = vmul.f32 %v863, %v922
      %v933 = vmul.f32 %v811, %v922
      %v934 = vmul.f32 %v873, %v922
      %v935 = vmul.f32 %v864, %v922
      %v936 = vmul.f32 %v814, %v922
      %v937 = vmul.f32 %v874, %v922
      %v938 = vmul.f32 %v865, %v922
      %v939 = vmul.f32 %v817, %v922
      %v940 = vmul.f32 %v875, %v922
      %v941 = vmul.f32 %v866, %v922
      %v942 = vmul.f32 %v820, %v922
      %v943 = vmul.f32 %v876, %v922
      %v944 = vmul.f32 %v867, %v922
      %v945 = vmul.f32 %v823, %v922
      %v946 = vmul.f32 %v877, %v922
      %vm971 = vcmask 1046528
      %v972 = vrot.slane %v923, 1
      %v973 = vrot.slane %v924, 1
      %v974 = vsel %vm971, %v972, %v973
      %v975 = vrot.slane %v925, 1
      %v976 = vsel %vm971, %v973, %v975
      %v977 = vrot.slane %v926, 1
      %v978 = vrot.slane %v927, 1
      %v979 = vsel %vm971, %v977, %v978
      %v980 = vrot.slane %v928, 1
      %v981 = vsel %vm971, %v978, %v980
      %v982 = vrot.slane %v929, 1
      %v983 = vrot.slane %v930, 1
      %v984 = vsel %vm971, %v982, %v983
      %v985 = vrot.slane %v931, 1
      %v986 = vsel %vm971, %v983, %v985
      %v987 = vrot.slane %v932, 1
      %v988 = vrot.slane %v933, 1
      %v989 = vsel %vm971, %v987, %v988
      %v990 = vrot.slane %v934, 1
      %v991 = vsel %vm971, %v988, %v990
      %v992 = vrot.slane %v935, 1
      %v993 = vrot.slane %v936, 1
      %v994 = vsel %vm971, %v992, %v993
      %v995 = vrot.slane %v937, 1
      %v996 = vsel %vm971, %v993, %v995
      %v997 = vrot.slane %v938, 1
      %v998 = vrot.slane %v939, 1
      %v999 = vsel %vm971, %v997, %v998
      %v1000 = vrot.slane %v940, 1
      %v1001 = vsel %vm971, %v998, %v1000
      %v1002 = vrot.slane %v941, 1
      %v1003 = vrot.slane %v942, 1
      %v1004 = vsel %vm971, %v1002, %v1003
      %v1005 = vrot.slane %v943, 1
      %v1006 = vsel %vm971, %v1003, %v1005
      %v1007 = vrot.slane %v944, 1
      %v1008 = vrot.slane %v945, 1
      %v1009 = vsel %vm971, %v1007, %v1008
      %v1010 = vrot.slane %v946, 1
      %v1011 = vsel %vm971, %v1008, %v1010
      %v1028 = vadd.f32 %v903, %v974
      %v1029 = vadd.f32 %v904, %v976
      %v1030 = vadd.f32 %v905, %v979
      %v1031 = vadd.f32 %v906, %v981
      %v1032 = vadd.f32 %v907, %v984
      %v1033 = vadd.f32 %v908, %v986
      %v1034 = vadd.f32 %v909, %v989
      %v1035 = vadd.f32 %v910, %v991
      %v1036 = vadd.f32 %v911, %v994
      %v1037 = vadd.f32 %v912, %v996
      %v1038 = vadd.f32 %v913, %v999
      %v1039 = vadd.f32 %v914, %v1001
      %v1040 = vadd.f32 %v915, %v1004
      %v1041 = vadd.f32 %v916, %v1006
      %v1042 = vadd.f32 %v917, %v1009
      %v1043 = vadd.f32 %v918, %v1011
      %v1044 = vlaneseq
      %v1045 = vshrl.u32 %v1044, 7
      %v1046 = vsub.s32 2, %v1045
      %v1047 = vrot.slane %v880, %v1046
      %v1048 = vmul.f32 %v860, %v1047
      %v1049 = vmul.f32 %v802, %v1047
      %v1050 = vmul.f32 %v870, %v1047
      %v1051 = vmul.f32 %v861, %v1047
      %v1052 = vmul.f32 %v805, %v1047
      %v1053 = vmul.f32 %v871, %v1047
      %v1054 = vmul.f32 %v862, %v1047
      %v1055 = vmul.f32 %v808, %v1047
      %v1056 = vmul.f32 %v872, %v1047
      %v1057 = vmul.f32 %v863, %v1047
      %v1058 = vmul.f32 %v811, %v1047
      %v1059 = vmul.f32 %v873, %v1047
      %v1060 = vmul.f32 %v864, %v1047
      %v1061 = vmul.f32 %v814, %v1047
      %v1062 = vmul.f32 %v874, %v1047
      %v1063 = vmul.f32 %v865, %v1047
      %v1064 = vmul.f32 %v817, %v1047
      %v1065 = vmul.f32 %v875, %v1047
      %v1066 = vmul.f32 %v866, %v1047
      %v1067 = vmul.f32 %v820, %v1047
      %v1068 = vmul.f32 %v876, %v1047
      %v1069 = vmul.f32 %v867, %v1047
      %v1070 = vmul.f32 %v823, %v1047
      %v1071 = vmul.f32 %v877, %v1047
      %vm1096 = vcmask 1045504
      %v1097 = vrot.slane %v1048, 2
      %v1098 = vrot.slane %v1049, 2
      %v1099 = vsel %vm1096, %v1097, %v1098
      %v1100 = vrot.slane %v1050, 2
      %v1101 = vsel %vm1096, %v1098, %v1100
      %v1102 = vrot.slane %v1051, 2
      %v1103 = vrot.slane %v1052, 2
      %v1104 = vsel %vm1096, %v1102, %v1103
      %v1105 = vrot.slane %v1053, 2
      %v1106 = vsel %vm1096, %v1103, %v1105
      %v1107 = vrot.slane %v1054, 2
      %v1108 = vrot.slane %v1055, 2
      %v1109 = vsel %vm1096, %v1107, %v1108
      %v1110 = vrot.slane %v1056, 2
      %v1111 = vsel %vm1096, %v1108, %v1110
      %v1112 = vrot.slane %v1057, 2
      %v1113 = vrot.slane %v1058, 2
      %v1114 = vsel %vm1096, %v1112, %v1113
      %v1115 = vrot.slane %v1059, 2
      %v1116 = vsel %vm1096, %v1113, %v1115
      %v1117 = vrot.slane %v1060, 2
      %v1118 = vrot.slane %v1061, 2
      %v1119 = vsel %vm1096, %v1117, %v1118
      %v1120 = vrot.slane %v1062, 2
      %v1121 = vsel %vm1096, %v1118, %v1120
      %v1122 = vrot.slane %v1063, 2
      %v1123 = vrot.slane %v1064, 2
      %v1124 = vsel %vm1096, %v1122, %v1123
      %v1125 = vrot.slane %v1065, 2
      %v1126 = vsel %vm1096, %v1123, %v1125
      %v1127 = vrot.slane %v1066, 2
      %v1128 = vrot.slane %v1067, 2
      %v1129 = vsel %vm1096, %v1127, %v1128
      %v1130 = vrot.slane %v1068, 2
      %v1131 = vsel %vm1096, %v1128, %v1130
      %v1132 = vrot.slane %v1069, 2
      %v1133 = vrot.slane %v1070, 2
      %v1134 = vsel %vm1096, %v1132, %v1133
      %v1135 = vrot.slane %v1071, 2
      %v1136 = vsel %vm1096, %v1133, %v1135
      %v1153 = vadd.f32 %v1028, %v1099
      %v1154 = vadd.f32 %v1029, %v1101
      %v1155 = vadd.f32 %v1030, %v1104
      %v1156 = vadd.f32 %v1031, %v1106
      %v1157 = vadd.f32 %v1032, %v1109
      %v1158 = vadd.f32 %v1033, %v1111
      %v1159 = vadd.f32 %v1034, %v1114
      %v1160 = vadd.f32 %v1035, %v1116
      %v1161 = vadd.f32 %v1036, %v1119
      %v1162 = vadd.f32 %v1037, %v1121
      %v1163 = vadd.f32 %v1038, %v1124
      %v1164 = vadd.f32 %v1039, %v1126
      %v1165 = vadd.f32 %v1040, %v1129
      %v1166 = vadd.f32 %v1041, %v1131
      %v1167 = vadd.f32 %v1042, %v1134
      %v1168 = vadd.f32 %v1043, %v1136
      %v1169 = vlaneseq
      %v1170 = vshrl.u32 %v1169, 7
      %v1171 = vsub.s32 3, %v1170
      %v1172 = vrot.slane %v880, %v1171
      %v1173 = vmul.f32 %v861, %v1172
      %v1174 = vmul.f32 %v805, %v1172
      %v1175 = vmul.f32 %v862, %v1172
      %v1176 = vmul.f32 %v808, %v1172
      %v1177 = vmul.f32 %v863, %v1172
      %v1178 = vmul.f32 %v811, %v1172
      %v1179 = vmul.f32 %v864, %v1172
      %v1180 = vmul.f32 %v814, %v1172
      %v1181 = vmul.f32 %v865, %v1172
      %v1182 = vmul.f32 %v817, %v1172
      %v1183 = vmul.f32 %v866, %v1172
      %v1184 = vmul.f32 %v820, %v1172
      %v1185 = vmul.f32 %v867, %v1172
      %v1186 = vmul.f32 %v823, %v1172
      %v1187 = vmul.f32 %v868, %v1172
      %v1188 = vmul.f32 %v826, %v1172
      %v1189 = vadd.f32 %v1153, %v1173
      %v1190 = vadd.f32 %v1154, %v1174
      %v1191 = vadd.f32 %v1155, %v1175
      %v1192 = vadd.f32 %v1156, %v1176
      %v1193 = vadd.f32 %v1157, %v1177
      %v1194 = vadd.f32 %v1158, %v1178
      %v1195 = vadd.f32 %v1159, %v1179
      %v1196 = vadd.f32 %v1160, %v1180
      %v1197 = vadd.f32 %v1161, %v1181
      %v1198 = vadd.f32 %v1162, %v1182
      %v1199 = vadd.f32 %v1163, %v1183
      %v1200 = vadd.f32 %v1164, %v1184
      %v1201 = vadd.f32 %v1165, %v1185
      %v1202 = vadd.f32 %v1166, %v1186
      %v1203 = vadd.f32 %v1167, %v1187
      %v1204 = vadd.f32 %v1168, %v1188
      %v1205 = vlaneseq
      %v1206 = vshrl.u32 %v1205, 7
      %v1207 = vsub.s32 4, %v1206
      %v1208 = vrot.slane %v880, %v1207
      %v1209 = vmul.f32 %v861, %v1208
      %v1210 = vmul.f32 %v805, %v1208
      %v1211 = vmul.f32 %v871, %v1208
      %v1212 = vmul.f32 %v862, %v1208
      %v1213 = vmul.f32 %v808, %v1208
      %v1214 = vmul.f32 %v872, %v1208
      %v1215 = vmul.f32 %v863, %v1208
      %v1216 = vmul.f32 %v811, %v1208
      %v1217 = vmul.f32 %v873, %v1208
      %v1218 = vmul.f32 %v864, %v1208
      %v1219 = vmul.f32 %v814, %v1208
      %v1220 = vmul.f32 %v874, %v1208
      %v1221 = vmul.f32 %v865, %v1208
      %v1222 = vmul.f32 %v817, %v1208
      %v1223 = vmul.f32 %v875, %v1208
      %v1224 = vmul.f32 %v866, %v1208
      %v1225 = vmul.f32 %v820, %v1208
      %v1226 = vmul.f32 %v876, %v1208
      %v1227 = vmul.f32 %v867, %v1208
      %v1228 = vmul.f32 %v823, %v1208
      %v1229 = vmul.f32 %v877, %v1208
      %v1230 = vmul.f32 %v868, %v1208
      %v1231 = vmul.f32 %v826, %v1208
      %v1232 = vmul.f32 %v878, %v1208
      %v1257 = vrot.slane %v1209, 1
      %v1258 = vrot.slane %v1210, 1
      %v1259 = vsel %vm971, %v1257, %v1258
      %v1260 = vrot.slane %v1211, 1
      %v1261 = vsel %vm971, %v1258, %v1260
      %v1262 = vrot.slane %v1212, 1
      %v1263 = vrot.slane %v1213, 1
      %v1264 = vsel %vm971, %v1262, %v1263
      %v1265 = vrot.slane %v1214, 1
      %v1266 = vsel %vm971, %v1263, %v1265
      %v1267 = vrot.slane %v1215, 1
      %v1268 = vrot.slane %v1216, 1
      %v1269 = vsel %vm971, %v1267, %v1268
      %v1270 = vrot.slane %v1217, 1
      %v1271 = vsel %vm971, %v1268, %v1270
      %v1272 = vrot.slane %v1218, 1
      %v1273 = vrot.slane %v1219, 1
      %v1274 = vsel %vm971, %v1272, %v1273
      %v1275 = vrot.slane %v1220, 1
      %v1276 = vsel %vm971, %v1273, %v1275
      %v1277 = vrot.slane %v1221, 1
      %v1278 = vrot.slane %v1222, 1
      %v1279 = vsel %vm971, %v1277, %v1278
      %v1280 = vrot.slane %v1223, 1
      %v1281 = vsel %vm971, %v1278, %v1280
      %v1282 = vrot.slane %v1224, 1
      %v1283 = vrot.slane %v1225, 1
      %v1284 = vsel %vm971, %v1282, %v1283
      %v1285 = vrot.slane %v1226, 1
      %v1286 = vsel %vm971, %v1283, %v1285
      %v1287 = vrot.slane %v1227, 1
      %v1288 = vrot.slane %v1228, 1
      %v1289 = vsel %vm971, %v1287, %v1288
      %v1290 = vrot.slane %v1229, 1
      %v1291 = vsel %vm971, %v1288, %v1290
      %v1292 = vrot.slane %v1230, 1
      %v1293 = vrot.slane %v1231, 1
      %v1294 = vsel %vm971, %v1292, %v1293
      %v1295 = vrot.slane %v1232, 1
      %v1296 = vsel %vm971, %v1293, %v1295
      %v1313 = vadd.f32 %v1189, %v1259
      %v1314 = vadd.f32 %v1190, %v1261
      %v1315 = vadd.f32 %v1191, %v1264
      %v1316 = vadd.f32 %v1192, %v1266
      %v1317 = vadd.f32 %v1193, %v1269
      %v1318 = vadd.f32 %v1194, %v1271
      %v1319 = vadd.f32 %v1195, %v1274
      %v1320 = vadd.f32 %v1196, %v1276
      %v1321 = vadd.f32 %v1197, %v1279
      %v1322 = vadd.f32 %v1198, %v1281
      %v1323 = vadd.f32 %v1199, %v1284
      %v1324 = vadd.f32 %v1200, %v1286
      %v1325 = vadd.f32 %v1201, %v1289
      %v1326 = vadd.f32 %v1202, %v1291
      %v1327 = vadd.f32 %v1203, %v1294
      %v1328 = vadd.f32 %v1204, %v1296
      %v1329 = vlaneseq
      %v1330 = vshrl.u32 %v1329, 7
      %v1331 = vsub.s32 5, %v1330
      %v1332 = vrot.slane %v880, %v1331
      %v1333 = vmul.f32 %v861, %v1332
      %v1334 = vmul.f32 %v805, %v1332
      %v1335 = vmul.f32 %v871, %v1332
      %v1336 = vmul.f32 %v862, %v1332
      %v1337 = vmul.f32 %v808, %v1332
      %v1338 = vmul.f32 %v872, %v1332
      %v1339 = vmul.f32 %v863, %v1332
      %v1340 = vmul.f32 %v811, %v1332
      %v1341 = vmul.f32 %v873, %v1332
      %v1342 = vmul.f32 %v864, %v1332
      %v1343 = vmul.f32 %v814, %v1332
      %v1344 = vmul.f32 %v874, %v1332
      %v1345 = vmul.f32 %v865, %v1332
      %v1346 = vmul.f32 %v817, %v1332
      %v1347 = vmul.f32 %v875, %v1332
      %v1348 = vmul.f32 %v866, %v1332
      %v1349 = vmul.f32 %v820, %v1332
      %v1350 = vmul.f32 %v876, %v1332
      %v1351 = vmul.f32 %v867, %v1332
      %v1352 = vmul.f32 %v823, %v1332
      %v1353 = vmul.f32 %v877, %v1332
      %v1354 = vmul.f32 %v868, %v1332
      %v1355 = vmul.f32 %v826, %v1332
      %v1356 = vmul.f32 %v878, %v1332
      %v1381 = vrot.slane %v1333, 2
      %v1382 = vrot.slane %v1334, 2
      %v1383 = vsel %vm1096, %v1381, %v1382
      %v1384 = vrot.slane %v1335, 2
      %v1385 = vsel %vm1096, %v1382, %v1384
      %v1386 = vrot.slane %v1336, 2
      %v1387 = vrot.slane %v1337, 2
      %v1388 = vsel %vm1096, %v1386, %v1387
      %v1389 = vrot.slane %v1338, 2
      %v1390 = vsel %vm1096, %v1387, %v1389
      %v1391 = vrot.slane %v1339, 2
      %v1392 = vrot.slane %v1340, 2
      %v1393 = vsel %vm1096, %v1391, %v1392
      %v1394 = vrot.slane %v1341, 2
      %v1395 = vsel %vm1096, %v1392, %v1394
      %v1396 = vrot.slane %v1342, 2
      %v1397 = vrot.slane %v1343, 2
      %v1398 = vsel %vm1096, %v1396, %v1397
      %v1399 = vrot.slane %v1344, 2
      %v1400 = vsel %vm1096, %v1397, %v1399
      %v1401 = vrot.slane %v1345, 2
      %v1402 = vrot.slane %v1346, 2
      %v1403 = vsel %vm1096, %v1401, %v1402
      %v1404 = vrot.slane %v1347, 2
      %v1405 = vsel %vm1096, %v1402, %v1404
      %v1406 = vrot.slane %v1348, 2
      %v1407 = vrot.slane %v1349, 2
      %v1408 = vsel %vm1096, %v1406, %v1407
      %v1409 = vrot.slane %v1350, 2
      %v1410 = vsel %vm1096, %v1407, %v1409
      %v1411 = vrot.slane %v1351, 2
      %v1412 = vrot.slane %v1352, 2
      %v1413 = vsel %vm1096, %v1411, %v1412
      %v1414 = vrot.slane %v1353, 2
      %v1415 = vsel %vm1096, %v1412, %v1414
      %v1416 = vrot.slane %v1354, 2
      %v1417 = vrot.slane %v1355, 2
      %v1418 = vsel %vm1096, %v1416, %v1417
      %v1419 = vrot.slane %v1356, 2
      %v1420 = vsel %vm1096, %v1417, %v1419
      %v1437 = vadd.f32 %v1313, %v1383
      %v1438 = vadd.f32 %v1314, %v1385
      %v1439 = vadd.f32 %v1315, %v1388
      %v1440 = vadd.f32 %v1316, %v1390
      %v1441 = vadd.f32 %v1317, %v1393
      %v1442 = vadd.f32 %v1318, %v1395
      %v1443 = vadd.f32 %v1319, %v1398
      %v1444 = vadd.f32 %v1320, %v1400
      %v1445 = vadd.f32 %v1321, %v1403
      %v1446 = vadd.f32 %v1322, %v1405
      %v1447 = vadd.f32 %v1323, %v1408
      %v1448 = vadd.f32 %v1324, %v1410
      %v1449 = vadd.f32 %v1325, %v1413
      %v1450 = vadd.f32 %v1326, %v1415
      %v1451 = vadd.f32 %v1327, %v1418
      %v1452 = vadd.f32 %v1328, %v1420
      %v1453 = vlaneseq
      %v1454 = vshrl.u32 %v1453, 7
      %v1455 = vsub.s32 6, %v1454
      %v1456 = vrot.slane %v880, %v1455
      %v1457 = vmul.f32 %v862, %v1456
      %v1458 = vmul.f32 %v808, %v1456
      %v1459 = vmul.f32 %v863, %v1456
      %v1460 = vmul.f32 %v811, %v1456
      %v1461 = vmul.f32 %v864, %v1456
      %v1462 = vmul.f32 %v814, %v1456
      %v1463 = vmul.f32 %v865, %v1456
      %v1464 = vmul.f32 %v817, %v1456
      %v1465 = vmul.f32 %v866, %v1456
      %v1466 = vmul.f32 %v820, %v1456
      %v1467 = vmul.f32 %v867, %v1456
      %v1468 = vmul.f32 %v823, %v1456
      %v1469 = vmul.f32 %v868, %v1456
      %v1470 = vmul.f32 %v826, %v1456
      %v1471 = vmul.f32 %v869, %v1456
      %v1472 = vmul.f32 %v829, %v1456
      %v1473 = vadd.f32 %v1437, %v1457
      %v1474 = vadd.f32 %v1438, %v1458
      %v1475 = vadd.f32 %v1439, %v1459
      %v1476 = vadd.f32 %v1440, %v1460
      %v1477 = vadd.f32 %v1441, %v1461
      %v1478 = vadd.f32 %v1442, %v1462
      %v1479 = vadd.f32 %v1443, %v1463
      %v1480 = vadd.f32 %v1444, %v1464
      %v1481 = vadd.f32 %v1445, %v1465
      %v1482 = vadd.f32 %v1446, %v1466
      %v1483 = vadd.f32 %v1447, %v1467
      %v1484 = vadd.f32 %v1448, %v1468
      %v1485 = vadd.f32 %v1449, %v1469
      %v1486 = vadd.f32 %v1450, %v1470
      %v1487 = vadd.f32 %v1451, %v1471
      %v1488 = vadd.f32 %v1452, %v1472
      %v1489 = vlaneseq
      %v1490 = vshrl.u32 %v1489, 7
      %v1491 = vsub.s32 7, %v1490
      %v1492 = vrot.slane %v880, %v1491
      %v1493 = vmul.f32 %v862, %v1492
      %v1494 = vmul.f32 %v808, %v1492
      %v1495 = vmul.f32 %v872, %v1492
      %v1496 = vmul.f32 %v863, %v1492
      %v1497 = vmul.f32 %v811, %v1492
      %v1498 = vmul.f32 %v873, %v1492
      %v1499 = vmul.f32 %v864, %v1492
      %v1500 = vmul.f32 %v814, %v1492
      %v1501 = vmul.f32 %v874, %v1492
      %v1502 = vmul.f32 %v865, %v1492
      %v1503 = vmul.f32 %v817, %v1492
      %v1504 = vmul.f32 %v875, %v1492
      %v1505 = vmul.f32 %v866, %v1492
      %v1506 = vmul.f32 %v820, %v1492
      %v1507 = vmul.f32 %v876, %v1492
      %v1508 = vmul.f32 %v867, %v1492
      %v1509 = vmul.f32 %v823, %v1492
      %v1510 = vmul.f32 %v877, %v1492
      %v1511 = vmul.f32 %v868, %v1492
      %v1512 = vmul.f32 %v826, %v1492
      %v1513 = vmul.f32 %v878, %v1492
      %v1514 = vmul.f32 %v869, %v1492
      %v1515 = vmul.f32 %v829, %v1492
      %v1516 = vmul.f32 %v879, %v1492
      %v1541 = vrot.slane %v1493, 1
      %v1542 = vrot.slane %v1494, 1
      %v1543 = vsel %vm971, %v1541, %v1542
      %v1544 = vrot.slane %v1495, 1
      %v1545 = vsel %vm971, %v1542, %v1544
      %v1546 = vrot.slane %v1496, 1
      %v1547 = vrot.slane %v1497, 1
      %v1548 = vsel %vm971, %v1546, %v1547
      %v1549 = vrot.slane %v1498, 1
      %v1550 = vsel %vm971, %v1547, %v1549
      %v1551 = vrot.slane %v1499, 1
      %v1552 = vrot.slane %v1500, 1
      %v1553 = vsel %vm971, %v1551, %v1552
      %v1554 = vrot.slane %v1501, 1
      %v1555 = vsel %vm971, %v1552, %v1554
      %v1556 = vrot.slane %v1502, 1
      %v1557 = vrot.slane %v1503, 1
      %v1558 = vsel %vm971, %v1556, %v1557
      %v1559 = vrot.slane %v1504, 1
      %v1560 = vsel %vm971, %v1557, %v1559
      %v1561 = vrot.slane %v1505, 1
      %v1562 = vrot.slane %v1506, 1
      %v1563 = vsel %vm971, %v1561, %v1562
      %v1564 = vrot.slane %v1507, 1
      %v1565 = vsel %vm971, %v1562, %v1564
      %v1566 = vrot.slane %v1508, 1
      %v1567 = vrot.slane %v1509, 1
      %v1568 = vsel %vm971, %v1566, %v1567
      %v1569 = vrot.slane %v1510, 1
      %v1570 = vsel %vm971, %v1567, %v1569
      %v1571 = vrot.slane %v1511, 1
      %v1572 = vrot.slane %v1512, 1
      %v1573 = vsel %vm971, %v1571, %v1572
      %v1574 = vrot.slane %v1513, 1
      %v1575 = vsel %vm971, %v1572, %v1574
      %v1576 = vrot.slane %v1514, 1
      %v1577 = vrot.slane %v1515, 1
      %v1578 = vsel %vm971, %v1576, %v1577
      %v1579 = vrot.slane %v1516, 1
      %v1580 = vsel %vm971, %v1577, %v1579
      %v1597 = vadd.f32 %v1473, %v1543
      %v1598 = vadd.f32 %v1474, %v1545
      %v1599 = vadd.f32 %v1475, %v1548
      %v1600 = vadd.f32 %v1476, %v1550
      %v1601 = vadd.f32 %v1477, %v1553
      %v1602 = vadd.f32 %v1478, %v1555
      %v1603 = vadd.f32 %v1479, %v1558
      %v1604 = vadd.f32 %v1480, %v1560
      %v1605 = vadd.f32 %v1481, %v1563
      %v1606 = vadd.f32 %v1482, %v1565
      %v1607 = vadd.f32 %v1483, %v1568
      %v1608 = vadd.f32 %v1484, %v1570
      %v1609 = vadd.f32 %v1485, %v1573
      %v1610 = vadd.f32 %v1486, %v1575
      %v1611 = vadd.f32 %v1487, %v1578
      %v1612 = vadd.f32 %v1488, %v1580
      %v1613 = vlaneseq
      %v1614 = vshrl.u32 %v1613, 7
      %v1615 = vsub.s32 0, %v1614
      %v1616 = vrot.slane %v881, %v1615
      %v1617 = vmul.f32 %v862, %v1616
      %v1618 = vmul.f32 %v808, %v1616
      %v1619 = vmul.f32 %v872, %v1616
      %v1620 = vmul.f32 %v863, %v1616
      %v1621 = vmul.f32 %v811, %v1616
      %v1622 = vmul.f32 %v873, %v1616
      %v1623 = vmul.f32 %v864, %v1616
      %v1624 = vmul.f32 %v814, %v1616
      %v1625 = vmul.f32 %v874, %v1616
      %v1626 = vmul.f32 %v865, %v1616
      %v1627 = vmul.f32 %v817, %v1616
      %v1628 = vmul.f32 %v875, %v1616
      %v1629 = vmul.f32 %v866, %v1616
      %v1630 = vmul.f32 %v820, %v1616
      %v1631 = vmul.f32 %v876, %v1616
      %v1632 = vmul.f32 %v867, %v1616
      %v1633 = vmul.f32 %v823, %v1616
      %v1634 = vmul.f32 %v877, %v1616
      %v1635 = vmul.f32 %v868, %v1616
      %v1636 = vmul.f32 %v826, %v1616
      %v1637 = vmul.f32 %v878, %v1616
      %v1638 = vmul.f32 %v869, %v1616
      %v1639 = vmul.f32 %v829, %v1616
      %v1640 = vmul.f32 %v879, %v1616
      %v1665 = vrot.slane %v1617, 2
      %v1666 = vrot.slane %v1618, 2
      %v1667 = vsel %vm1096, %v1665, %v1666
      %v1668 = vrot.slane %v1619, 2
      %v1669 = vsel %vm1096, %v1666, %v1668
      %v1670 = vrot.slane %v1620, 2
      %v1671 = vrot.slane %v1621, 2
      %v1672 = vsel %vm1096, %v1670, %v1671
      %v1673 = vrot.slane %v1622, 2
      %v1674 = vsel %vm1096, %v1671, %v1673
      %v1675 = vrot.slane %v1623, 2
      %v1676 = vrot.slane %v1624, 2
      %v1677 = vsel %vm1096, %v1675, %v1676
      %v1678 = vrot.slane %v1625, 2
      %v1679 = vsel %vm1096, %v1676, %v1678
      %v1680 = vrot.slane %v1626, 2
      %v1681 = vrot.slane %v1627, 2
      %v1682 = vsel %vm1096, %v1680, %v1681
      %v1683 = vrot.slane %v1628, 2
      %v1684 = vsel %vm1096, %v1681, %v1683
      %v1685 = vrot.slane %v1629, 2
      %v1686 = vrot.slane %v1630, 2
      %v1687 = vsel %vm1096, %v1685, %v1686
      %v1688 = vrot.slane %v1631, 2
      %v1689 = vsel %vm1096, %v1686, %v1688
      %v1690 = vrot.slane %v1632, 2
      %v1691 = vrot.slane %v1633, 2
      %v1692 = vsel %vm1096, %v1690, %v1691
      %v1693 = vrot.slane %v1634, 2
      %v1694 = vsel %vm1096, %v1691, %v1693
      %v1695 = vrot.slane %v1635, 2
      %v1696 = vrot.slane %v1636, 2
      %v1697 = vsel %vm1096, %v1695, %v1696
      %v1698 = vrot.slane %v1637, 2
      %v1699 = vsel %vm1096, %v1696, %v1698
      %v1700 = vrot.slane %v1638, 2
      %v1701 = vrot.slane %v1639, 2
      %v1702 = vsel %vm1096, %v1700, %v1701
      %v1703 = vrot.slane %v1640, 2
      %v1704 = vsel %vm1096, %v1701, %v1703
      %v1721 = vadd.f32 %v1597, %v1667
      %v1722 = vadd.f32 %v1598, %v1669
      %v1723 = vadd.f32 %v1599, %v1672
      %v1724 = vadd.f32 %v1600, %v1674
      %v1725 = vadd.f32 %v1601, %v1677
      %v1726 = vadd.f32 %v1602, %v1679
      %v1727 = vadd.f32 %v1603, %v1682
      %v1728 = vadd.f32 %v1604, %v1684
      %v1729 = vadd.f32 %v1605, %v1687
      %v1730 = vadd.f32 %v1606, %v1689
      %v1731 = vadd.f32 %v1607, %v1692
      %v1732 = vadd.f32 %v1608, %v1694
      %v1733 = vadd.f32 %v1609, %v1697
      %v1734 = vadd.f32 %v1610, %v1699
      %v1735 = vadd.f32 %v1611, %v1702
      %v1736 = vadd.f32 %v1612, %v1704
      %v1738 = vlaneseq
      %v1739 = vshrl.u32 %v1738, 7
      %v1740 = vsub.s32 0, %v1739
      %v1741 = vrot.slane %v882, %v1740
      %v1743 = vadd.f32 %v1721, %v1741
      %v1744 = vadd.f32 %v1722, %v1741
      %v1745 = vadd.f32 %v1723, %v1741
      %v1746 = vadd.f32 %v1724, %v1741
      %v1747 = vadd.f32 %v1725, %v1741
      %v1748 = vadd.f32 %v1726, %v1741
      %v1749 = vadd.f32 %v1727, %v1741
      %v1750 = vadd.f32 %v1728, %v1741
      %v1751 = vadd.f32 %v1729, %v1741
      %v1752 = vadd.f32 %v1730, %v1741
      %v1753 = vadd.f32 %v1731, %v1741
      %v1754 = vadd.f32 %v1732, %v1741
      %v1755 = vadd.f32 %v1733, %v1741
      %v1756 = vadd.f32 %v1734, %v1741
      %v1757 = vadd.f32 %v1735, %v1741
      %v1758 = vadd.f32 %v1736, %v1741
      %v1759 = vmax.f32 %v1743, 0.0
      %v1760 = vmax.f32 %v1744, 0.0
      %v1761 = vmax.f32 %v1745, 0.0
      %v1762 = vmax.f32 %v1746, 0.0
      %v1763 = vmax.f32 %v1747, 0.0
      %v1764 = vmax.f32 %v1748, 0.0
      %v1765 = vmax.f32 %v1749, 0.0
      %v1766 = vmax.f32 %v1750, 0.0
      %v1767 = vmax.f32 %v1751, 0.0
      %v1768 = vmax.f32 %v1752, 0.0
      %v1769 = vmax.f32 %v1753, 0.0
      %v1770 = vmax.f32 %v1754, 0.0
      %v1771 = vmax.f32 %v1755, 0.0
      %v1772 = vmax.f32 %v1756, 0.0
      %v1773 = vmax.f32 %v1757, 0.0
      %v1774 = vmax.f32 %v1758, 0.0
      %v1775 = vmin.f32 %v1759, 6.0
      %v1776 = vmin.f32 %v1760, 6.0
      %v1777 = vmin.f32 %v1761, 6.0
      %v1778 = vmin.f32 %v1762, 6.0
      %v1779 = vmin.f32 %v1763, 6.0
      %v1780 = vmin.f32 %v1764, 6.0
      %v1781 = vmin.f32 %v1765, 6.0
      %v1782 = vmin.f32 %v1766, 6.0
      %v1783 = vmin.f32 %v1767, 6.0
      %v1784 = vmin.f32 %v1768, 6.0
      %v1785 = vmin.f32 %v1769, 6.0
      %v1786 = vmin.f32 %v1770, 6.0
      %v1787 = vmin.f32 %v1771, 6.0
      %v1788 = vmin.f32 %v1772, 6.0
      %v1789 = vmin.f32 %v1773, 6.0
      %v1790 = vmin.f32 %v1774, 6.0
      %v1791 = vld [vmem:[%s5] sm:$0xff]
      %v1792 = vld [vmem:[%s5 + $0x8] sm:$0xff]
      %v1793 = vld [vmem:[%s5 + $0x10] sm:$0xff]
      %v1794 = vld [vmem:[%s5 + $0x18] sm:$0xff]
      %v1795 = vld [vmem:[%s5 + $0x20] sm:$0xff]
      %v1796 = vld [vmem:[%s5 + $0x28] sm:$0xff]
      %v1797 = vld [vmem:[%s5 + $0x30] sm:$0xff]
      %v1798 = vld [vmem:[%s5 + $0x38] sm:$0xff]
      %v1799 = vld [vmem:[%s5 + $0x40] sm:$0xff]
      %v1800 = vld [vmem:[%s5 + $0x48] sm:$0xff]
      %v1801 = vld [vmem:[%s5 + $0x50] sm:$0xff]
      %v1802 = vld [vmem:[%s5 + $0x58] sm:$0xff]
      %v1803 = vld [vmem:[%s5 + $0x60] sm:$0xff]
      %v1804 = vld [vmem:[%s5 + $0x68] sm:$0xff]
      %v1805 = vld [vmem:[%s5 + $0x70] sm:$0xff]
      %v1806 = vld [vmem:[%s5 + $0x78] sm:$0xff]
      %v1807 = vld [vmem:[%s6] sm:$0x1]
      %v1809 = vlaneseq
      %v1810 = vshrl.u32 %v1809, 7
      %v1811 = vsub.s32 0, %v1810
      %v1812 = vrot.slane %v1807, %v1811
      %1814 = vmatprep.subr.mxu0 0.0
      %1815 = vmatpush1.msra.mxu0 %v1806
      %1816 = vmatprep.subr.mxu0 0.0
      %1817 = vmatpush1.msra.mxu0 %v1805
      %1818 = vmatprep.subr.mxu0 0.0
      %1819 = vmatpush1.msra.mxu0 %v1804
      %1820 = vmatprep.subr.mxu0 0.0
      %1821 = vmatpush1.msra.mxu0 %v1803
      %1822 = vmatprep.subr.mxu0 0.0
      %1823 = vmatpush1.msra.mxu0 %v1802
      %1824 = vmatprep.subr.mxu0 0.0
      %1825 = vmatpush1.msra.mxu0 %v1801
      %1826 = vmatprep.subr.mxu0 0.0
      %1827 = vmatpush1.msra.mxu0 %v1800
      %1828 = vmatprep.subr.mxu0 0.0
      %1829 = vmatpush1.msra.mxu0 %v1799
      %1830 = vmatprep.subr.mxu0 0.0
      %1831 = vmatpush1.msra.mxu0 %v1798
      %1832 = vmatprep.subr.mxu0 0.0
      %1833 = vmatpush1.msra.mxu0 %v1797
      %1834 = vmatprep.subr.mxu0 0.0
      %1835 = vmatpush1.msra.mxu0 %v1796
      %1836 = vmatprep.subr.mxu0 0.0
      %1837 = vmatpush1.msra.mxu0 %v1795
      %1838 = vmatprep.subr.mxu0 0.0
      %1839 = vmatpush1.msra.mxu0 %v1794
      %1840 = vmatprep.subr.mxu0 0.0
      %1841 = vmatpush1.msra.mxu0 %v1793
      %1842 = vmatprep.subr.mxu0 0.0
      %1843 = vmatpush1.msra.mxu0 %v1792
      %1844 = vmatprep.subr.mxu0 0.0
      %1845 = vmatpush1.msra.mxu0 %v1791
      %1846 = vmatprep.subr.mxu0 0.0
      %1847 = vmatpush2.msra.mxu0 0.0
      %1848 = vmatprep.subr.mxu0 0.0
      %1849 = vmatpush2.msra.mxu0 0.0
      %1850 = vmatprep.subr.mxu0 0.0
      %1851 = vmatpush2.msra.mxu0 0.0
      %1852 = vmatprep.subr.mxu0 0.0
      %1853 = vmatpush2.msra.mxu0 0.0
      %1854 = vmatprep.subr.mxu0 0.0
      %1855 = vmatpush2.msra.mxu0 0.0
      %1856 = vmatprep.subr.mxu0 0.0
      %1857 = vmatpush2.msra.mxu0 0.0
      %1858 = vmatprep.subr.mxu0 0.0
      %1859 = vmatpush2.msra.mxu0 0.0
      %1860 = vmatprep.subr.mxu0 0.0
      %1861 = vmatpush2.msra.mxu0 0.0
      %1862 = vmatprep.subr.mxu0 0.0
      %1863 = vmatpush2.msra.mxu0 0.0
      %1864 = vmatprep.subr.mxu0 0.0
      %1865 = vmatpush2.msra.mxu0 0.0
      %1866 = vmatprep.subr.mxu0 0.0
      %1867 = vmatpush2.msra.mxu0 0.0
      %1868 = vmatprep.subr.mxu0 0.0
      %1869 = vmatpush2.msra.mxu0 0.0
      %1870 = vmatprep.subr.mxu0 0.0
      %1871 = vmatpush2.msra.mxu0 0.0
      %1872 = vmatprep.subr.mxu0 0.0
      %1873 = vmatpush2.msra.mxu0 0.0
      %1874 = vmatprep.subr.mxu0 0.0
      %1875 = vmatpush2.msra.mxu0 0.0
      %1876 = vmatprep.subr.mxu0 0.0
      %1877 = vmatpush2.msra.mxu0 0.0
      %1878 = vmatprep.mubr.f32.mxu0 0.0
      %1879 = vmatmul.mubr.f32.gmra.mxu0 %v1775
      %v1880 = vpop.f32.mrf.mxu0
      %v1881 = vadd.f32 %v1812, %v1880
      %v1882 = vpop.f32.mrf.mxu0
      %1883 = vmatprep.mubr.f32.mxu0 0.0
      %1884 = vmatmul.mubr.f32.gmra.mxu0 %v1776
      %v1885 = vpop.f32.mrf.mxu0
      %v1886 = vadd.f32 %v1812, %v1885
      %v1887 = vpop.f32.mrf.mxu0
      %1888 = vmatprep.mubr.f32.mxu0 0.0
      %1889 = vmatmul.mubr.f32.gmra.mxu0 %v1777
      %v1890 = vpop.f32.mrf.mxu0
      %v1891 = vadd.f32 %v1812, %v1890
      %v1892 = vpop.f32.mrf.mxu0
      %1893 = vmatprep.mubr.f32.mxu0 0.0
      %1894 = vmatmul.mubr.f32.gmra.mxu0 %v1778
      %v1895 = vpop.f32.mrf.mxu0
      %v1896 = vadd.f32 %v1812, %v1895
      %v1897 = vpop.f32.mrf.mxu0
      %1898 = vmatprep.mubr.f32.mxu0 0.0
      %1899 = vmatmul.mubr.f32.gmra.mxu0 %v1779
      %v1900 = vpop.f32.mrf.mxu0
      %v1901 = vadd.f32 %v1812, %v1900
      %v1902 = vpop.f32.mrf.mxu0
      %1903 = vmatprep.mubr.f32.mxu0 0.0
      %1904 = vmatmul.mubr.f32.gmra.mxu0 %v1780
      %v1905 = vpop.f32.mrf.mxu0
      %v1906 = vadd.f32 %v1812, %v1905
      %v1907 = vpop.f32.mrf.mxu0
      %1908 = vmatprep.mubr.f32.mxu0 0.0
      %1909 = vmatmul.mubr.f32.gmra.mxu0 %v1781
      %v1910 = vpop.f32.mrf.mxu0
      %v1911 = vadd.f32 %v1812, %v1910
      %v1912 = vpop.f32.mrf.mxu0
      %1913 = vmatprep.mubr.f32.mxu0 0.0
      %1914 = vmatmul.mubr.f32.gmra.mxu0 %v1782
      %v1915 = vpop.f32.mrf.mxu0
      %v1916 = vadd.f32 %v1812, %v1915
      %v1917 = vpop.f32.mrf.mxu0
      %1918 = vmatprep.mubr.f32.mxu0 0.0
      %1919 = vmatmul.mubr.f32.gmra.mxu0 %v1783
      %v1920 = vpop.f32.mrf.mxu0
      %v1921 = vadd.f32 %v1812, %v1920
      %v1922 = vpop.f32.mrf.mxu0
      %1923 = vmatprep.mubr.f32.mxu0 0.0
      %1924 = vmatmul.mubr.f32.gmra.mxu0 %v1784
      %v1925 = vpop.f32.mrf.mxu0
      %v1926 = vadd.f32 %v1812, %v1925
      %v1927 = vpop.f32.mrf.mxu0
      %1928 = vmatprep.mubr.f32.mxu0 0.0
      %1929 = vmatmul.mubr.f32.gmra.mxu0 %v1785
      %v1930 = vpop.f32.mrf.mxu0
      %v1931 = vadd.f32 %v1812, %v1930
      %v1932 = vpop.f32.mrf.mxu0
      %1933 = vmatprep.mubr.f32.mxu0 0.0
      %1934 = vmatmul.mubr.f32.gmra.mxu0 %v1786
      %v1935 = vpop.f32.mrf.mxu0
      %v1936 = vadd.f32 %v1812, %v1935
      %v1937 = vpop.f32.mrf.mxu0
      %1938 = vmatprep.mubr.f32.mxu0 0.0
      %1939 = vmatmul.mubr.f32.gmra.mxu0 %v1787
      %v1940 = vpop.f32.mrf.mxu0
      %v1941 = vadd.f32 %v1812, %v1940
      %v1942 = vpop.f32.mrf.mxu0
      %1943 = vmatprep.mubr.f32.mxu0 0.0
      %1944 = vmatmul.mubr.f32.gmra.mxu0 %v1788
      %v1945 = vpop.f32.mrf.mxu0
      %v1946 = vadd.f32 %v1812, %v1945
      %v1947 = vpop.f32.mrf.mxu0
      %1948 = vmatprep.mubr.f32.mxu0 0.0
      %1949 = vmatmul.mubr.f32.gmra.mxu0 %v1789
      %v1950 = vpop.f32.mrf.mxu0
      %v1951 = vadd.f32 %v1812, %v1950
      %v1952 = vpop.f32.mrf.mxu0
      %1953 = vmatprep.mubr.f32.mxu0 0.0
      %1954 = vmatmul.mubr.f32.gmra.mxu0 %v1790
      %v1955 = vpop.f32.mrf.mxu0
      %v1956 = vadd.f32 %v1812, %v1955
      %v1957 = vpop.f32.mrf.mxu0
      %1958 = vdwg.mxu0
      %s1959 = smul.u32 %s331, 16
      %s1960 = scalar_lea.vmem %s319, %s1959
      %v1961 = vld [vmem:[%s1960] sm:$0xff]
      %v1962 = vld [vmem:[%s1960 + $0x8] sm:$0xff]
      %v1963 = vld [vmem:[%s1960 + $0x10] sm:$0xff]
      %v1964 = vld [vmem:[%s1960 + $0x18] sm:$0xff]
      %v1965 = vld [vmem:[%s1960 + $0x20] sm:$0xff]
      %v1966 = vld [vmem:[%s1960 + $0x28] sm:$0xff]
      %v1967 = vld [vmem:[%s1960 + $0x30] sm:$0xff]
      %v1968 = vld [vmem:[%s1960 + $0x38] sm:$0xff]
      %v1969 = vld [vmem:[%s1960 + $0x40] sm:$0xff]
      %v1970 = vld [vmem:[%s1960 + $0x48] sm:$0xff]
      %v1971 = vld [vmem:[%s1960 + $0x50] sm:$0xff]
      %v1972 = vld [vmem:[%s1960 + $0x58] sm:$0xff]
      %v1973 = vld [vmem:[%s1960 + $0x60] sm:$0xff]
      %v1974 = vld [vmem:[%s1960 + $0x68] sm:$0xff]
      %v1975 = vld [vmem:[%s1960 + $0x70] sm:$0xff]
      %v1976 = vld [vmem:[%s1960 + $0x78] sm:$0xff]
      %v1977 = vld [vmem:[%s7] sm:$0xf]
      %v1979 = vsel %vm429, %v1961, 0
      %v1982 = vsel %vm429, %v1962, 0
      %v1985 = vsel %vm429, %v1963, 0
      %v1988 = vsel %vm429, %v1964, 0
      %v1991 = vsel %vm429, %v1965, 0
      %v1994 = vsel %vm429, %v1966, 0
      %v1997 = vsel %vm429, %v1967, 0
      %v2000 = vsel %vm429, %v1968, 0
      %v2003 = vsel %vm429, %v1969, 0
      %v2006 = vsel %vm429, %v1970, 0
      %v2009 = vsel %vm429, %v1971, 0
      %v2012 = vsel %vm429, %v1972, 0
      %v2015 = vsel %vm429, %v1973, 0
      %v2018 = vsel %vm429, %v1974, 0
      %v2021 = vsel %vm429, %v1975, 0
      %v2024 = vsel %vm429, %v1976, 0
      %v2027 = vsel %vm490, %v1977, 0
      %2029 = vmatprep.subr.mxu0 0.0
      %2030 = vmatpush1.msra.mxu0 0.0
      %2031 = vmatprep.subr.mxu0 0.0
      %2032 = vmatpush1.msra.mxu0 0.0
      %2033 = vmatprep.subr.mxu0 0.0
      %2034 = vmatpush1.msra.mxu0 0.0
      %2035 = vmatprep.subr.mxu0 0.0
      %2036 = vmatpush1.msra.mxu0 0.0
      %2037 = vmatprep.subr.mxu0 0.0
      %2038 = vmatpush1.msra.mxu0 0.0
      %2039 = vmatprep.subr.mxu0 0.0
      %2040 = vmatpush1.msra.mxu0 0.0
      %2041 = vmatprep.subr.mxu0 0.0
      %2042 = vmatpush1.msra.mxu0 0.0
      %2043 = vmatprep.subr.mxu0 0.0
      %2044 = vmatpush1.msra.mxu0 0.0
      %2045 = vmatprep.subr.mxu0 0.0
      %2046 = vmatpush1.msra.mxu0 0.0
      %2047 = vmatprep.subr.mxu0 0.0
      %2048 = vmatpush1.msra.mxu0 0.0
      %2049 = vmatprep.subr.mxu0 0.0
      %2050 = vmatpush1.msra.mxu0 0.0
      %2051 = vmatprep.subr.mxu0 0.0
      %2052 = vmatpush1.msra.mxu0 0.0
      %2053 = vmatprep.subr.mxu0 0.0
      %2054 = vmatpush1.msra.mxu0 0.0
      %2055 = vmatprep.subr.mxu0 0.0
      %2056 = vmatpush1.msra.mxu0 0.0
      %2057 = vmatprep.subr.mxu0 0.0
      %2058 = vmatpush1.msra.mxu0 0.0
      %2059 = vmatprep.subr.mxu0 0.0
      %2060 = vmatpush1.msra.mxu0 %v2027
      %2061 = vmatprep.subr.mxu0 0.0
      %2062 = vmatpush2.msra.mxu0 0.0
      %2063 = vmatprep.subr.mxu0 0.0
      %2064 = vmatpush2.msra.mxu0 0.0
      %2065 = vmatprep.subr.mxu0 0.0
      %2066 = vmatpush2.msra.mxu0 0.0
      %2067 = vmatprep.subr.mxu0 0.0
      %2068 = vmatpush2.msra.mxu0 0.0
      %2069 = vmatprep.subr.mxu0 0.0
      %2070 = vmatpush2.msra.mxu0 0.0
      %2071 = vmatprep.subr.mxu0 0.0
      %2072 = vmatpush2.msra.mxu0 0.0
      %2073 = vmatprep.subr.mxu0 0.0
      %2074 = vmatpush2.msra.mxu0 0.0
      %2075 = vmatprep.subr.mxu0 0.0
      %2076 = vmatpush2.msra.mxu0 0.0
      %2077 = vmatprep.subr.mxu0 0.0
      %2078 = vmatpush2.msra.mxu0 0.0
      %2079 = vmatprep.subr.mxu0 0.0
      %2080 = vmatpush2.msra.mxu0 0.0
      %2081 = vmatprep.subr.mxu0 0.0
      %2082 = vmatpush2.msra.mxu0 0.0
      %2083 = vmatprep.subr.mxu0 0.0
      %2084 = vmatpush2.msra.mxu0 0.0
      %2085 = vmatprep.subr.mxu0 0.0
      %2086 = vmatpush2.msra.mxu0 0.0
      %2087 = vmatprep.subr.mxu0 0.0
      %2088 = vmatpush2.msra.mxu0 0.0
      %2089 = vmatprep.subr.mxu0 0.0
      %2090 = vmatpush2.msra.mxu0 0.0
      %2091 = vmatprep.subr.mxu0 0.0
      %2092 = vmatpush2.msra.mxu0 0.0
      %2093 = vmatprep.mubr.f32.mxu0 0.0
      %2094 = vmatmul.mubr.f32.gmra.mxu0 %v1979
      %v2095 = vpop.f32.mrf.mxu0
      %v2096 = vadd.f32 0.0, %v2095
      %v2097 = vpop.f32.mrf.mxu0
      %2098 = vmatprep.mubr.f32.mxu0 0.0
      %2099 = vmatmul.mubr.f32.gmra.mxu0 %v1982
      %v2100 = vpop.f32.mrf.mxu0
      %v2101 = vadd.f32 0.0, %v2100
      %v2102 = vpop.f32.mrf.mxu0
      %2103 = vmatprep.mubr.f32.mxu0 0.0
      %2104 = vmatmul.mubr.f32.gmra.mxu0 %v1985
      %v2105 = vpop.f32.mrf.mxu0
      %v2106 = vadd.f32 0.0, %v2105
      %v2107 = vpop.f32.mrf.mxu0
      %2108 = vmatprep.mubr.f32.mxu0 0.0
      %2109 = vmatmul.mubr.f32.gmra.mxu0 %v1988
      %v2110 = vpop.f32.mrf.mxu0
      %v2111 = vadd.f32 0.0, %v2110
      %v2112 = vpop.f32.mrf.mxu0
      %2113 = vmatprep.mubr.f32.mxu0 0.0
      %2114 = vmatmul.mubr.f32.gmra.mxu0 %v1991
      %v2115 = vpop.f32.mrf.mxu0
      %v2116 = vadd.f32 0.0, %v2115
      %v2117 = vpop.f32.mrf.mxu0
      %2118 = vmatprep.mubr.f32.mxu0 0.0
      %2119 = vmatmul.mubr.f32.gmra.mxu0 %v1994
      %v2120 = vpop.f32.mrf.mxu0
      %v2121 = vadd.f32 0.0, %v2120
      %v2122 = vpop.f32.mrf.mxu0
      %2123 = vmatprep.mubr.f32.mxu0 0.0
      %2124 = vmatmul.mubr.f32.gmra.mxu0 %v1997
      %v2125 = vpop.f32.mrf.mxu0
      %v2126 = vadd.f32 0.0, %v2125
      %v2127 = vpop.f32.mrf.mxu0
      %2128 = vmatprep.mubr.f32.mxu0 0.0
      %2129 = vmatmul.mubr.f32.gmra.mxu0 %v2000
      %v2130 = vpop.f32.mrf.mxu0
      %v2131 = vadd.f32 0.0, %v2130
      %v2132 = vpop.f32.mrf.mxu0
      %2133 = vmatprep.mubr.f32.mxu0 0.0
      %2134 = vmatmul.mubr.f32.gmra.mxu0 %v2003
      %v2135 = vpop.f32.mrf.mxu0
      %v2136 = vadd.f32 0.0, %v2135
      %v2137 = vpop.f32.mrf.mxu0
      %2138 = vmatprep.mubr.f32.mxu0 0.0
      %2139 = vmatmul.mubr.f32.gmra.mxu0 %v2006
      %v2140 = vpop.f32.mrf.mxu0
      %v2141 = vadd.f32 0.0, %v2140
      %v2142 = vpop.f32.mrf.mxu0
      %2143 = vmatprep.mubr.f32.mxu0 0.0
      %2144 = vmatmul.mubr.f32.gmra.mxu0 %v2009
      %v2145 = vpop.f32.mrf.mxu0
      %v2146 = vadd.f32 0.0, %v2145
      %v2147 = vpop.f32.mrf.mxu0
      %2148 = vmatprep.mubr.f32.mxu0 0.0
      %2149 = vmatmul.mubr.f32.gmra.mxu0 %v2012
      %v2150 = vpop.f32.mrf.mxu0
      %v2151 = vadd.f32 0.0, %v2150
      %v2152 = vpop.f32.mrf.mxu0
      %2153 = vmatprep.mubr.f32.mxu0 0.0
      %2154 = vmatmul.mubr.f32.gmra.mxu0 %v2015
      %v2155 = vpop.f32.mrf.mxu0
      %v2156 = vadd.f32 0.0, %v2155
      %v2157 = vpop.f32.mrf.mxu0
      %2158 = vmatprep.mubr.f32.mxu0 0.0
      %2159 = vmatmul.mubr.f32.gmra.mxu0 %v2018
      %v2160 = vpop.f32.mrf.mxu0
      %v2161 = vadd.f32 0.0, %v2160
      %v2162 = vpop.f32.mrf.mxu0
      %2163 = vmatprep.mubr.f32.mxu0 0.0
      %2164 = vmatmul.mubr.f32.gmra.mxu0 %v2021
      %v2165 = vpop.f32.mrf.mxu0
      %v2166 = vadd.f32 0.0, %v2165
      %v2167 = vpop.f32.mrf.mxu0
      %2168 = vmatprep.mubr.f32.mxu0 0.0
      %2169 = vmatmul.mubr.f32.gmra.mxu0 %v2024
      %v2170 = vpop.f32.mrf.mxu0
      %v2171 = vadd.f32 0.0, %v2170
      %v2172 = vpop.f32.mrf.mxu0
      %2173 = vdwg.mxu0
      %v2174 = vadd.f32 %v1881, %v2096
      %v2175 = vadd.f32 %v1886, %v2101
      %v2176 = vadd.f32 %v1891, %v2106
      %v2177 = vadd.f32 %v1896, %v2111
      %v2178 = vadd.f32 %v1901, %v2116
      %v2179 = vadd.f32 %v1906, %v2121
      %v2180 = vadd.f32 %v1911, %v2126
      %v2181 = vadd.f32 %v1916, %v2131
      %v2182 = vadd.f32 %v1921, %v2136
      %v2183 = vadd.f32 %v1926, %v2141
      %v2184 = vadd.f32 %v1931, %v2146
      %v2185 = vadd.f32 %v1936, %v2151
      %v2186 = vadd.f32 %v1941, %v2156
      %v2187 = vadd.f32 %v1946, %v2161
      %v2188 = vadd.f32 %v1951, %v2166
      %v2189 = vadd.f32 %v1956, %v2171
      %2190 = vst [vmem:[%s329] sm:$0xff] %v2174
      %2191 = vst [vmem:[%s329 + $0x8] sm:$0xff] %v2175
      %2192 = vst [vmem:[%s329 + $0x10] sm:$0xff] %v2176
      %2193 = vst [vmem:[%s329 + $0x18] sm:$0xff] %v2177
      %2194 = vst [vmem:[%s329 + $0x20] sm:$0xff] %v2178
      %2195 = vst [vmem:[%s329 + $0x28] sm:$0xff] %v2179
      %2196 = vst [vmem:[%s329 + $0x30] sm:$0xff] %v2180
      %2197 = vst [vmem:[%s329 + $0x38] sm:$0xff] %v2181
      %2198 = vst [vmem:[%s329 + $0x40] sm:$0xff] %v2182
      %2199 = vst [vmem:[%s329 + $0x48] sm:$0xff] %v2183
      %2200 = vst [vmem:[%s329 + $0x50] sm:$0xff] %v2184
      %2201 = vst [vmem:[%s329 + $0x58] sm:$0xff] %v2185
      %2202 = vst [vmem:[%s329 + $0x60] sm:$0xff] %v2186
      %2203 = vst [vmem:[%s329 + $0x68] sm:$0xff] %v2187
      %2204 = vst [vmem:[%s329 + $0x70] sm:$0xff] %v2188
      %2205 = vst [vmem:[%s329 + $0x78] sm:$0xff] %v2189
      %s2206 = smul.u32 8, %s24
      %p2207 = scmp.lt.s32.totalorder %s23, 1
      %s2208 = scalar_select %p2207, %s23, 1
      %p2209 = scmp.lt.s32.totalorder %s2206, 15
      %s2210 = scalar_select %p2209, %s2206, 15
      %s2211 = smul.addr %s2210, 2
      %s2212 = smul.addr %s2208, 32
      %s2213 = sadd.s32 %s2211, %s2212
      %s2214 = smul.addr %s2213, 8
      %s2215 = scalar_lea.vmem %s8, %s2214
      // Predicated region
      $region53: #{conv2_unit_forward.1} parent=51 // pred_check
        %p2216 = pneg %p224
      $region54: #{conv2_unit_forward.1} parent=51 // pred_check_branch
        %2218 = sbr.rel (%p2216) target = $region56
      $region55: #{conv2_unit_forward.1} parent=51 // pred_region
        %s2219 = smul.u32 8, %s24
      $region56: #{conv2_unit_forward.1} parent=51 // pred_fallthru
        _
    $region52: #{conv2_unit_forward.1} parent=5 // pred_fallthru
      _
    %p2220 = scmp.le.s32.totalorder 2, %s14
    // Predicated region
    $region57: #{conv2_unit_forward.1} parent=5 // pred_check
      %p2221 = pneg %p2220
    $region58: #{conv2_unit_forward.1} parent=5 // pred_check_branch
      %2223 = sbr.rel (%p2221) target = $region60
    $region59: #{conv2_unit_forward.1} parent=5 // pred_region
      %s2224 = ssub.s32 %s14, 2
      // Predicated region
      $region61: #{conv2_unit_forward.1} parent=59 // pred_check
        %p2225 = pneg %p230
      $region62: #{conv2_unit_forward.1} parent=59 // pred_check_branch
        %2227 = sbr.rel (%p2225) target = $region64
      $region63: #{conv2_unit_forward.1} parent=59 // pred_region
        %s2228 = smul.u32 8, %s26
        %p2229 = scmp.lt.s32.totalorder %s25, 1
        %s2230 = scalar_select %p2229, %s25, 1
        %p2231 = scmp.lt.s32.totalorder %s2228, 15
        %s2232 = scalar_select %p2231, %s2228, 15
        %s2233 = smul.addr %s2232, 2
        %s2234 = smul.addr %s2230, 32
        %s2235 = sadd.s32 %s2233, %s2234
        %s2236 = smul.addr %s2235, 8
        %s2237 = scalar_lea.vmem %s8, %s2236
      $region64: #{conv2_unit_forward.1} parent=59 // pred_fallthru
        _
    $region60: #{conv2_unit_forward.1} parent=5 // pred_fallthru
      _
  $region6: #{conv2_unit_forward.1} parent=0 // loop_footer
    %s18 = sadd.s32 1, %s14
  $region7: #{conv2_unit_forward.1} parent=0 // loop_footer_branch
    %13 = sbr.rel target = $region3
  $region8: #{conv2_unit_forward.1} parent=0 // loop_exit
    _

</llo_original>
